<compile_context>
chip_gen: v6e
topology: v6e:2x2x1
jax: 0.10.0
libtpu: 0.0.40
codegen_flags: <defaults>
</compile_context>

<pallas_src>
import math
import numpy as np
import jax
import jax.numpy as jnp
from jax import lax
from jax.experimental import pallas as pl
from jax.experimental.pallas import tpu as pltpu

PREC = jax.lax.Precision.HIGHEST   # only used by the pure-JAX reference

CH = 8      # time-chunk size (one f32 sublane tile)
PADL = 8    # aligned left/right halo for the conv scratch


# ----------------------------------------------------------------------------
# Pallas kernel (one batch element per grid step)
# ----------------------------------------------------------------------------
def _mamba_mixer_kernel(
    hs_ref,       # (L, d_model)            bf16 input tokens
    w_in_ref,     # (d_model, d_inner)      bf16 in_proj weight, transposed (fused x|z)
    wconv_ref,    # (d_conv, d_inner)       f32  depthwise conv taps (x|z fused on lanes)
    w_dtc_ref,    # (d_half, d_half)        bf16 folded dt projection (x_proj dt rows @ dt_proj)
    w_bc_ref,     # (2*d_state, d_half)     bf16 x_proj rows for B then C (not transposed)
    dt_bias_ref,  # (1, d_half)             f32
    a_t_ref,      # (d_state, d_half)       f32  A^T with A = -exp(A_log)
    d_vec_ref,    # (1, d_half)             f32
    w_out_ref,    # (d_inner, d_model)      bf16 out_proj, transposed, fused [y|z] rows
    out_ref,      # (L, d_model)            f32
    pad_scr,      # (2*PADL + L, d_inner)   f32 scratch: zero-halo conv input
    x_scr,        # (L, d_half)             f32 scratch: post-conv/SiLU x
    delta_scr,    # (L, d_half)             f32 scratch: softplus(dt)
    y_scr,        # (L, d_half)             f32 scratch: scan output
    z_scr,        # (L, d_half)             f32 scratch: post-conv/SiLU z
):
    f32 = jnp.float32
    bf16 = jnp.bfloat16

    L, d_model = hs_ref.shape
    d_conv, d_inner = wconv_ref.shape
    d_state, d_half = a_t_ref.shape
    lpad = (d_conv - 1) // 2          # F.conv1d padding='same': left 1, right 2 for k=4
    nchunks = L // CH

    def mxu(a, b):
        return jnp.dot(a, b, preferred_element_type=f32)

    # ---- fused in_proj: one (L, d_model) x (d_model, d_inner) bf16 matmul ----
    xz = mxu(hs_ref[...], w_in_ref[...])                     # (L, d_inner) f32

    # ---- depthwise conv1d (padding='same') via zero-halo scratch + SiLU ------
    # out[t, c] = sum_j w[j, c] * xz[t + j - lpad, c], zeros outside [0, L).
    # Only the halo strips are zeroed (the middle is fully overwritten each step,
    # so this stays correct under "parallel" grid semantics on either core).
    pad_scr[0:PADL, :] = jnp.zeros((PADL, d_inner), f32)
    pad_scr[PADL + L:2 * PADL + L, :] = jnp.zeros((PADL, d_inner), f32)
    pad_scr[PADL:PADL + L, :] = xz

    acc = xz * wconv_ref[lpad:lpad + 1, :]                   # center tap: reuse registers
    for j in range(d_conv):                                  # static taps, shifted reads
        if j == lpad:
            continue
        off = PADL - lpad + j
        acc = acc + pad_scr[off:off + L, :] * wconv_ref[j:j + 1, :]
    xzc = acc * jax.nn.sigmoid(acc)                          # SiLU, f32 on VPU/EUP

    x = xzc[:, 0:d_half]                                     # (L, d_half)
    z = xzc[:, d_half:d_inner]                               # (L, d_half)
    z_scr[...] = z

    # ---- dt path: single folded (L, d_half) x (d_half, d_half) bf16 matmul ---
    x_bf = x.astype(bf16)
    dt_lin = mxu(x_bf, w_dtc_ref[...])                       # (L, d_half) f32
    dt_b = dt_bias_ref[...]
    # dt_proj adds its bias AND the same bias is passed to selective_scan as
    # delta_bias -> added twice before softplus (verbatim module semantics).
    delta = jax.nn.softplus(dt_lin + dt_b + dt_b)

    x_scr[...] = x
    delta_scr[...] = delta

    # ---- selective scan: state h is (d_state, d_half), time chunked by CH ----
    a_T = a_t_ref[...]                                       # (d_state, d_half) f32
    d_row = d_vec_ref[...]                                   # (1, d_half)
    w_bc = w_bc_ref[...]                                     # (2*d_state, d_half) bf16

    def chunk_body(ci, h):
        c0 = pl.multiple_of(ci * CH, CH)
        x_c = x_scr[pl.ds(c0, CH), :]                        # (CH, d_half) f32
        dl_c = delta_scr[pl.ds(c0, CH), :]                   # (CH, d_half) f32

        # B/C for this chunk in (n, t) orientation. Issued before the EUP
        # precompute below so the MXU result latency hides under the exp work
        # and never sits at the head of the serial recurrence.
        bc_c = lax.dot_general(
            w_bc, x_c.astype(bf16),
            dimension_numbers=(((1,), (1,)), ((), ())),
            preferred_element_type=f32)                      # (2*d_state, CH)

        # Off-critical-path precompute (h-independent): per-step decay tiles and
        # delta*x rows. Keeps the per-step h chain to a single mul + add.
        dA = [jnp.exp(dl_c[t:t + 1, :] * a_T) for t in range(CH)]   # CH x (d_state, d_half)
        dx = [dl_c[t:t + 1, :] * x_c[t:t + 1, :] for t in range(CH)]  # CH x (1, d_half)

        for t in range(CH):                                  # static unroll within chunk
            b_col = bc_c[0:d_state, t:t + 1]                 # (d_state, 1)
            c_col = bc_c[d_state:2 * d_state, t:t + 1]       # (d_state, 1)
            h = dA[t] * h + dx[t] * b_col                    # (d_state, d_half)
            y_row = (jnp.sum(h * c_col, axis=0, keepdims=True)
                     + x_c[t:t + 1, :] * d_row)              # (1, d_half)
            y_scr[pl.ds(c0 + t, 1), :] = y_row               # direct 1-row store
        return h

    lax.fori_loop(0, nchunks, chunk_body,
                  jnp.zeros((d_state, d_half), f32))

    # ---- out_proj: one fused K = d_inner matmul over concat([y, z]) ----------
    yz = jnp.concatenate([y_scr[...], z_scr[...]], axis=1).astype(bf16)  # (L, d_inner)
    out_ref[...] = mxu(yz, w_out_ref[...]).astype(out_ref.dtype)


# ----------------------------------------------------------------------------
# Wrapper
# ----------------------------------------------------------------------------
def mamba_vision_mixer_pallas(x_nchw, kp):
    B, C, H, W = x_nchw.shape
    L = H * W
    d_model = C
    d_model_w, d_inner = kp["w_in"].shape
    assert d_model_w == d_model
    d_half = d_inner // 2
    # TODO(synk): handle L not divisible by the time chunk / d_half not lane-aligned
    # (pad the sequence / channels) instead of asserting.
    assert L % CH == 0, "sequence length must be a multiple of the time chunk (8)"
    assert d_half % 128 == 0, "d_inner//2 must be a multiple of 128 for lane alignment"

    hs = jnp.transpose(x_nchw.reshape(B, C, L), (0, 2, 1)).astype(jnp.bfloat16)  # (B, L, C)

    weights = [kp["w_in"], kp["wconv"], kp["w_dtc"], kp["w_bc"],
               kp["dt_bias"], kp["a_t"], kp["d_vec"], kp["w_out_t"]]

    def full_spec(arr):
        nd = arr.ndim
        return pl.BlockSpec(arr.shape, lambda b, _nd=nd: (0,) * _nd)

    in_specs = [pl.BlockSpec((None, L, d_model), lambda b: (b, 0, 0))]
    in_specs += [full_spec(w) for w in weights]
    out_specs = pl.BlockSpec((None, L, d_model), lambda b: (b, 0, 0))

    # VMEM budget: only the blocked I/O is double-buffered by the pipeline; weights
    # and scratch are single-buffered. Capped at 48 MiB so v7x (64 MiB) keeps headroom.
    io_bytes = L * d_model * (2 + 4)                                  # bf16 in + f32 out
    weight_bytes = sum(int(w.size) * w.dtype.itemsize for w in weights)
    scratch_bytes = 4 * ((2 * PADL + L) * d_inner + 4 * L * d_half)
    vmem_limit = int(min(48 * 2**20,
                         max(16 * 2**20,
                             2 * io_bytes + weight_bytes + scratch_bytes + 4 * 2**20)))

    out_bld = pl.pallas_call(
        _mamba_mixer_kernel,
        out_shape=jax.ShapeDtypeStruct((B, L, d_model), jnp.float32),
        grid=(B,),
        in_specs=in_specs,
        out_specs=out_specs,
        scratch_shapes=[
            pltpu.VMEM((2 * PADL + L, d_inner), jnp.float32),  # conv halo buffer
            pltpu.VMEM((L, d_half), jnp.float32),              # x (post conv/SiLU)
            pltpu.VMEM((L, d_half), jnp.float32),              # delta
            pltpu.VMEM((L, d_half), jnp.float32),              # y (scan output)
            pltpu.VMEM((L, d_half), jnp.float32),              # z (post conv/SiLU)
        ],
        compiler_params=pltpu.CompilerParams(
            dimension_semantics=("parallel",),                 # batch shards across TCs
            vmem_limit_bytes=vmem_limit,
        ),
    )(hs, *weights)

    return jnp.transpose(out_bld, (0, 2, 1)).reshape(B, C, H, W)


# ----------------------------------------------------------------------------
# Deterministic parameter construction (mirrors MambaVisionMixer.__init__ shapes)
# ----------------------------------------------------------------------------
def build_params(key, *, d_model, d_state, d_conv, expand,
                 dt_min=0.001, dt_max=0.1, dt_scale=1.0, dt_init_floor=1e-4):
    d_inner = int(expand * d_model)
    d_half = d_inner // 2
    dt_rank = math.ceil(d_model / 16)
    ks = jax.random.split(key, 7)

    def unif(k, shape, bound):
        return jax.random.uniform(k, shape, jnp.float32, -bound, bound)

    raw = {}
    raw["w_in"] = unif(ks[0], (d_inner, d_model), 1.0 / math.sqrt(d_model))              # in_proj.weight
    raw["w_xp"] = unif(ks[1], (dt_rank + 2 * d_state, d_half), 1.0 / math.sqrt(d_half))  # x_proj.weight
    dt_init_std = dt_rank ** (-0.5) * dt_scale
    raw["w_dt"] = unif(ks[2], (d_half, dt_rank), dt_init_std)                            # dt_proj.weight
    dt = jnp.exp(jax.random.uniform(ks[3], (d_half,), jnp.float32)
                 * (math.log(dt_max) - math.log(dt_min)) + math.log(dt_min))
    dt = jnp.maximum(dt, dt_init_floor)
    raw["dt_bias"] = dt + jnp.log(-jnp.expm1(-dt))                                       # dt_proj.bias
    raw["a_log"] = jnp.log(jnp.tile(jnp.arange(1, d_state + 1, dtype=jnp.float32)[None, :],
                                    (d_half, 1)))                                        # A_log
    raw["d_param"] = jnp.ones((d_half,), jnp.float32)                                    # D
    # conv bias is disabled in the module (bias = conv_bias // 2 == 0)
    raw["wconv_x"] = unif(ks[4], (d_half, d_conv), 1.0 / math.sqrt(d_conv))
    raw["wconv_z"] = unif(ks[5], (d_half, d_conv), 1.0 / math.sqrt(d_conv))
    raw["w_out"] = unif(ks[6], (d_model, d_inner), 1.0 / math.sqrt(d_inner))             # out_proj.weight

    bf16 = jnp.bfloat16
    # Fold the low-rank dt projection into one (d_half, d_half) weight (f32 on host).
    w_dt_comb = jnp.dot(jnp.transpose(raw["w_xp"][:dt_rank, :]),
                        jnp.transpose(raw["w_dt"]), precision=PREC)                      # (d_half, d_half)
    kp = {
        # bf16 operands for the MXU (f32 accumulation in-kernel)
        "w_in": jnp.transpose(raw["w_in"]).astype(bf16),                                 # (d_model, d_inner)
        "wconv": jnp.concatenate([jnp.transpose(raw["wconv_x"]),
                                  jnp.transpose(raw["wconv_z"])], axis=1),               # (d_conv, d_inner) f32
        "w_dtc": w_dt_comb.astype(bf16),                                                 # (d_half, d_half)
        "w_bc": raw["w_xp"][dt_rank:, :].astype(bf16),                                   # (2*d_state, d_half)
        "dt_bias": raw["dt_bias"].reshape(1, d_half),                                    # f32
        "a_t": jnp.transpose(-jnp.exp(raw["a_log"])),                                    # (d_state, d_half) f32
        "d_vec": raw["d_param"].reshape(1, d_half),                                      # f32
        "w_out_t": jnp.transpose(raw["w_out"]).astype(bf16),                             # (d_inner, d_model)
    }
    dims = dict(d_model=d_model, d_state=d_state, d_conv=d_conv,
                d_inner=d_inner, d_half=d_half, dt_rank=dt_rank)
    return raw, kp, dims


# ----------------------------------------------------------------------------
# Pure-JAX reference (direct transcription of the PyTorch forward) for checking
# ----------------------------------------------------------------------------
def mamba_vision_mixer_ref(x_nchw, raw, dims):
    B, C, H, W = x_nchw.shape
    L = H * W
    d_state, dt_rank, d_conv = dims["d_state"], dims["dt_rank"], dims["d_conv"]
    d_half = dims["d_half"]

    hs = jnp.transpose(x_nchw.reshape(B, C, L), (0, 2, 1)).astype(jnp.float32)   # (B, L, D)
    xz = jnp.einsum("bld,ed->ble", hs, raw["w_in"], precision=PREC)              # (B, L, 2d)
    xz = jnp.transpose(xz, (0, 2, 1))                                            # (B, 2d, L)
    x, z = xz[:, :d_half], xz[:, d_half:]

    def dwconv(v, w):   # v: (B, d, L), w: (d, k); F.conv1d(padding='same', groups=d)
        total = d_conv - 1
        lp = total // 2
        rp = total - lp
        vp = jnp.pad(v, ((0, 0), (0, 0), (lp, rp)))
        return sum(w[None, :, j:j + 1] * vp[:, :, j:j + L] for j in range(d_conv))

    x = jax.nn.silu(dwconv(x, raw["wconv_x"]))
    z = jax.nn.silu(dwconv(z, raw["wconv_z"]))

    xt = jnp.transpose(x, (0, 2, 1))                                             # (B, L, d_half)
    x_dbl = jnp.einsum("bld,ed->ble", xt, raw["w_xp"], precision=PREC)
    dtl = x_dbl[..., :dt_rank]
    Bm = x_dbl[..., dt_rank:dt_rank + d_state]
    Cm = x_dbl[..., dt_rank + d_state:]

    delta = jnp.einsum("blr,dr->bld", dtl, raw["w_dt"], precision=PREC) + raw["dt_bias"]
    delta = jax.nn.softplus(delta + raw["dt_bias"])          # delta_bias applied again in selective_scan

    A = -jnp.exp(raw["a_log"])                               # (d_half, N)
    dA = jnp.exp(jnp.einsum("bld,dn->bldn", delta, A))
    dBu = jnp.einsum("bld,bln,bld->bldn", delta, Bm, xt)

    def step(h, inp):
        dA_t, dBu_t, C_t = inp
        h = dA_t * h + dBu_t
        y_t = jnp.einsum("bdn,bn->bd", h, C_t, precision=PREC)
        return h, y_t

    h0 = jnp.zeros((B, d_half, d_state), jnp.float32)
    _, ys = lax.scan(step, h0, (jnp.transpose(dA, (1, 0, 2, 3)),
                                jnp.transpose(dBu, (1, 0, 2, 3)),
                                jnp.transpose(Cm, (1, 0, 2))))
    y = jnp.transpose(ys, (1, 0, 2))                         # (B, L, d_half)
    y = y + xt * raw["d_param"][None, None, :]

    zt = jnp.transpose(z, (0, 2, 1))
    yz = jnp.concatenate([y, zt], axis=-1)
    out = jnp.einsum("ble,de->bld", yz, raw["w_out"], precision=PREC)
    return jnp.transpose(out, (0, 2, 1)).reshape(B, C, H, W)


# ----------------------------------------------------------------------------
if __name__ == "__main__":
    key = jax.random.PRNGKey(0)
    d_model, d_state, d_conv, expand = 128, 16, 4, 2     # d_half = 128 -> lane-aligned
    B, H, W = 2, 8, 8                                    # L = 64

    p_key, x_key = jax.random.split(key)
    raw, kp, dims = build_params(p_key, d_model=d_model, d_state=d_state,
                                 d_conv=d_conv, expand=expand)

    x = jax.random.normal(x_key, (B, d_model, H, W), jnp.float32)

    out = jax.block_until_ready(mamba_vision_mixer_pallas(x, kp))
    ref = jax.block_until_ready(mamba_vision_mixer_ref(x, raw, dims))

    assert out.shape == x.shape and out.dtype == jnp.float32
    err = float(jnp.max(jnp.abs(out - ref)))
    scale = float(jnp.max(jnp.abs(ref))) + 1e-6
    if not np.isfinite(err) or err > 5e-2 * max(1.0, scale):   # bf16-matmul tolerance
        raise AssertionError(f"Pallas kernel mismatch vs reference, max abs err = {err}")

    print("KERNEL_OK")
</pallas_src>

<mosaic_0001>
module attributes {stable_mosaic.version = 11 : i64} {
  func.func @_mamba_mixer_kernel(%arg0: i32, %arg1: memref<1x64x128xbf16, #tpu.memory_space<vmem>>, %arg2: memref<128x256xbf16, #tpu.memory_space<vmem>>, %arg3: memref<4x256xf32, #tpu.memory_space<vmem>>, %arg4: memref<128x128xbf16, #tpu.memory_space<vmem>>, %arg5: memref<32x128xbf16, #tpu.memory_space<vmem>>, %arg6: memref<1x128xf32, #tpu.memory_space<vmem>>, %arg7: memref<16x128xf32, #tpu.memory_space<vmem>>, %arg8: memref<1x128xf32, #tpu.memory_space<vmem>>, %arg9: memref<256x128xbf16, #tpu.memory_space<vmem>>, %arg10: memref<1x64x128xf32, #tpu.memory_space<vmem>>, %arg11: memref<80x256xf32, #tpu.memory_space<vmem>>, %arg12: memref<64x128xf32, #tpu.memory_space<vmem>>, %arg13: memref<64x128xf32, #tpu.memory_space<vmem>>, %arg14: memref<64x128xf32, #tpu.memory_space<vmem>>, %arg15: memref<64x128xf32, #tpu.memory_space<vmem>>) attributes {dimension_semantics = [#tpu.dimension_semantics<parallel>], iteration_bounds = array<i64: 2>, scalar_prefetch = 0 : i64, scratch_operands = 5 : i64, tpu.core_type = #tpu.core_type<tc>, window_params = [{transform_indices = @transform_0, window_bounds = array<i64: 1, 64, 128>}, {pipeline_mode = #tpu.pipeline_mode<synchronous>, transform_indices = @transform_1, window_bounds = array<i64: 128, 256>}, {pipeline_mode = #tpu.pipeline_mode<synchronous>, transform_indices = @transform_2, window_bounds = array<i64: 4, 256>}, {pipeline_mode = #tpu.pipeline_mode<synchronous>, transform_indices = @transform_3, window_bounds = array<i64: 128, 128>}, {pipeline_mode = #tpu.pipeline_mode<synchronous>, transform_indices = @transform_4, window_bounds = array<i64: 32, 128>}, {pipeline_mode = #tpu.pipeline_mode<synchronous>, transform_indices = @transform_5, window_bounds = array<i64: 1, 128>}, {pipeline_mode = #tpu.pipeline_mode<synchronous>, transform_indices = @transform_6, window_bounds = array<i64: 16, 128>}, {pipeline_mode = #tpu.pipeline_mode<synchronous>, transform_indices = @transform_7, window_bounds = array<i64: 1, 128>}, {pipeline_mode = #tpu.pipeline_mode<synchronous>, transform_indices = @transform_8, window_bounds = array<i64: 256, 128>}, {transform_indices = @transform_9, window_bounds = array<i64: 1, 64, 128>}]} {
    %c0 = arith.constant 0 : index
    %c0_0 = arith.constant 0 : index
    %c0_1 = arith.constant 0 : index
    %0 = vector.load %arg1[%c0, %c0_0, %c0_1] : memref<1x64x128xbf16, #tpu.memory_space<vmem>>, vector<1x64x128xbf16>
    %1 = vector.shape_cast %0 : vector<1x64x128xbf16> to vector<64x128xbf16>
    %c0_2 = arith.constant 0 : index
    %c0_3 = arith.constant 0 : index
    %2 = vector.load %arg2[%c0_2, %c0_3] : memref<128x256xbf16, #tpu.memory_space<vmem>>, vector<128x256xbf16>
    %cst = arith.constant dense<0.000000e+00> : vector<64x256xf32>
    %3 = tpu.matmul %1, %2, %cst {dimension_numbers = #tpu.dot_dimension_numbers<[1], [0], [0], [1], [0, 0, 1, 1], [], []>} : vector<64x128xbf16>, vector<128x256xbf16>, vector<64x256xf32> -> vector<64x256xf32>
    %cst_4 = arith.constant 0.000000e+00 : f32
    %4 = vector.broadcast %cst_4 : f32 to vector<8x256xf32>
    %c0_5 = arith.constant 0 : index
    %c0_6 = arith.constant 0 : index
    %5 = vector.load %arg11[%c0_5, %c0_6] : memref<80x256xf32, #tpu.memory_space<vmem>>, vector<8x256xf32>
    tpu.vector_store %arg11[%c0_5, %c0_6], %4 {strides = array<i32>} : memref<80x256xf32, #tpu.memory_space<vmem>>, vector<8x256xf32>,
    %cst_7 = arith.constant 0.000000e+00 : f32
    %6 = vector.broadcast %cst_7 : f32 to vector<8x256xf32>
    %c72 = arith.constant 72 : index
    %c0_8 = arith.constant 0 : index
    %7 = vector.load %arg11[%c72, %c0_8] : memref<80x256xf32, #tpu.memory_space<vmem>>, vector<8x256xf32>
    tpu.vector_store %arg11[%c72, %c0_8], %6 {strides = array<i32>} : memref<80x256xf32, #tpu.memory_space<vmem>>, vector<8x256xf32>,
    %c8 = arith.constant 8 : index
    %c0_9 = arith.constant 0 : index
    %8 = vector.load %arg11[%c8, %c0_9] : memref<80x256xf32, #tpu.memory_space<vmem>>, vector<64x256xf32>
    tpu.vector_store %arg11[%c8, %c0_9], %3 {strides = array<i32>} : memref<80x256xf32, #tpu.memory_space<vmem>>, vector<64x256xf32>,
    %c1 = arith.constant 1 : index
    %c0_10 = arith.constant 0 : index
    %9 = vector.load %arg3[%c1, %c0_10] : memref<4x256xf32, #tpu.memory_space<vmem>>, vector<1x256xf32>
    %10 = vector.broadcast %9 : vector<1x256xf32> to vector<64x256xf32>
    %11 = arith.mulf %3, %10 : vector<64x256xf32>
    %c7 = arith.constant 7 : index
    %c0_11 = arith.constant 0 : index
    %12 = vector.load %arg11[%c7, %c0_11] : memref<80x256xf32, #tpu.memory_space<vmem>>, vector<64x256xf32>
    %c0_12 = arith.constant 0 : index
    %c0_13 = arith.constant 0 : index
    %13 = vector.load %arg3[%c0_12, %c0_13] : memref<4x256xf32, #tpu.memory_space<vmem>>, vector<1x256xf32>
    %14 = vector.broadcast %13 : vector<1x256xf32> to vector<64x256xf32>
    %15 = arith.mulf %12, %14 : vector<64x256xf32>
    %16 = arith.addf %11, %15 : vector<64x256xf32>
    %c9 = arith.constant 9 : index
    %c0_14 = arith.constant 0 : index
    %17 = vector.load %arg11[%c9, %c0_14] : memref<80x256xf32, #tpu.memory_space<vmem>>, vector<64x256xf32>
    %c2 = arith.constant 2 : index
    %c0_15 = arith.constant 0 : index
    %18 = vector.load %arg3[%c2, %c0_15] : memref<4x256xf32, #tpu.memory_space<vmem>>, vector<1x256xf32>
    %19 = vector.broadcast %18 : vector<1x256xf32> to vector<64x256xf32>
    %20 = arith.mulf %17, %19 : vector<64x256xf32>
    %21 = arith.addf %16, %20 : vector<64x256xf32>
    %c10 = arith.constant 10 : index
    %c0_16 = arith.constant 0 : index
    %22 = vector.load %arg11[%c10, %c0_16] : memref<80x256xf32, #tpu.memory_space<vmem>>, vector<64x256xf32>
    %c3 = arith.constant 3 : index
    %c0_17 = arith.constant 0 : index
    %23 = vector.load %arg3[%c3, %c0_17] : memref<4x256xf32, #tpu.memory_space<vmem>>, vector<1x256xf32>
    %24 = vector.broadcast %23 : vector<1x256xf32> to vector<64x256xf32>
    %25 = arith.mulf %22, %24 : vector<64x256xf32>
    %26 = arith.addf %21, %25 : vector<64x256xf32>
    %27 = arith.negf %26 : vector<64x256xf32>
    %28 = math.exp %27 : vector<64x256xf32>
    %cst_18 = arith.constant 1.000000e+00 : f32
    %29 = vector.broadcast %cst_18 : f32 to vector<64x256xf32>
    %30 = arith.addf %29, %28 : vector<64x256xf32>
    %31 = arith.divf %29, %30 : vector<64x256xf32>
    %32 = arith.mulf %26, %31 : vector<64x256xf32>
    %33 = vector.extract_strided_slice %32 {offsets = [0, 0], sizes = [64, 128], strides = [1, 1]} : vector<64x256xf32> to vector<64x128xf32>
    %34 = vector.extract_strided_slice %32 {offsets = [0, 128], sizes = [64, 128], strides = [1, 1]} : vector<64x256xf32> to vector<64x128xf32>
    %c0_19 = arith.constant 0 : index
    %c0_20 = arith.constant 0 : index
    %35 = vector.load %arg15[%c0_19, %c0_20] : memref<64x128xf32, #tpu.memory_space<vmem>>, vector<64x128xf32>
    tpu.vector_store %arg15[%c0_19, %c0_20], %34 {strides = array<i32>} : memref<64x128xf32, #tpu.memory_space<vmem>>, vector<64x128xf32>,
    %36 = arith.truncf %33 : vector<64x128xf32> to vector<64x128xbf16>
    %c0_21 = arith.constant 0 : index
    %c0_22 = arith.constant 0 : index
    %37 = vector.load %arg4[%c0_21, %c0_22] : memref<128x128xbf16, #tpu.memory_space<vmem>>, vector<128x128xbf16>
    %cst_23 = arith.constant dense<0.000000e+00> : vector<64x128xf32>
    %38 = tpu.matmul %36, %37, %cst_23 {dimension_numbers = #tpu.dot_dimension_numbers<[1], [0], [0], [1], [0, 0, 1, 1], [], []>} : vector<64x128xbf16>, vector<128x128xbf16>, vector<64x128xf32> -> vector<64x128xf32>
    %c0_24 = arith.constant 0 : index
    %c0_25 = arith.constant 0 : index
    %39 = vector.load %arg6[%c0_24, %c0_25] : memref<1x128xf32, #tpu.memory_space<vmem>>, vector<1x128xf32>
    %40 = vector.broadcast %39 : vector<1x128xf32> to vector<64x128xf32>
    %41 = arith.addf %38, %40 : vector<64x128xf32>
    %42 = vector.broadcast %39 : vector<1x128xf32> to vector<64x128xf32>
    %43 = arith.addf %41, %42 : vector<64x128xf32>
    %cst_26 = arith.constant 0.000000e+00 : f32
    %44 = vector.broadcast %cst_26 : f32 to vector<64x128xf32>
    %45 = arith.maximumf %43, %44 : vector<64x128xf32>
    %46 = vector.broadcast %cst_26 : f32 to vector<64x128xf32>
    %47 = arith.subf %43, %46 : vector<64x128xf32>
    %48 = arith.cmpf one, %47, %47 : vector<64x128xf32>
    %49 = vector.broadcast %cst_26 : f32 to vector<64x128xf32>
    %50 = arith.addf %43, %49 : vector<64x128xf32>
    %51 = math.absf %47 : vector<64x128xf32>
    %cst_27 = arith.constant 0.000000e+00 : f32
    %52 = vector.broadcast %cst_27 : f32 to vector<64x128xf32>
    %53 = arith.subf %52, %51 : vector<64x128xf32>
    %54 = math.exp %53 : vector<64x128xf32>
    %55 = math.log1p %54 : vector<64x128xf32>
    %56 = arith.addf %45, %55 : vector<64x128xf32>
    %57 = arith.select %48, %50, %56 : vector<64x128xi1>, vector<64x128xf32>
    %c0_28 = arith.constant 0 : index
    %c0_29 = arith.constant 0 : index
    %58 = vector.load %arg12[%c0_28, %c0_29] : memref<64x128xf32, #tpu.memory_space<vmem>>, vector<64x128xf32>
    tpu.vector_store %arg12[%c0_28, %c0_29], %33 {strides = array<i32>} : memref<64x128xf32, #tpu.memory_space<vmem>>, vector<64x128xf32>,
    %c0_30 = arith.constant 0 : index
    %c0_31 = arith.constant 0 : index
    %59 = vector.load %arg13[%c0_30, %c0_31] : memref<64x128xf32, #tpu.memory_space<vmem>>, vector<64x128xf32>
    tpu.vector_store %arg13[%c0_30, %c0_31], %57 {strides = array<i32>} : memref<64x128xf32, #tpu.memory_space<vmem>>, vector<64x128xf32>,
    %c0_32 = arith.constant 0 : index
    %c0_33 = arith.constant 0 : index
    %60 = vector.load %arg7[%c0_32, %c0_33] : memref<16x128xf32, #tpu.memory_space<vmem>>, vector<16x128xf32>
    %c0_34 = arith.constant 0 : index
    %c0_35 = arith.constant 0 : index
    %61 = vector.load %arg8[%c0_34, %c0_35] : memref<1x128xf32, #tpu.memory_space<vmem>>, vector<1x128xf32>
    %c0_36 = arith.constant 0 : index
    %c0_37 = arith.constant 0 : index
    %62 = vector.load %arg5[%c0_36, %c0_37] : memref<32x128xbf16, #tpu.memory_space<vmem>>, vector<32x128xbf16>
    %cst_38 = arith.constant 0.000000e+00 : f32
    %63 = vector.broadcast %cst_38 : f32 to vector<16x128xf32>
    %c0_i32 = arith.constant 0 : i32
    %c8_i32 = arith.constant 8 : i32
    %64 = arith.addi %c0_i32, %c8_i32 : i32
    %c1_i32 = arith.constant 1 : i32
    %65 = scf.for %arg16 = %c0_i32 to %64 step %c1_i32 iter_args(%arg17 = %63) -> (vector<16x128xf32>)  : i32 {
      %c8_i32_50 = arith.constant 8 : i32
      %75 = arith.muli %arg16, %c8_i32_50 : i32
      %76 = tpu.assume_multiple %75, 8 : i32
      %77 = arith.index_cast %76 : i32 to index
      %c0_51 = arith.constant 0 : index
      %78 = vector.load %arg12[%77, %c0_51] : memref<64x128xf32, #tpu.memory_space<vmem>>, vector<8x128xf32>
      %79 = arith.index_cast %76 : i32 to index
      %c0_52 = arith.constant 0 : index
      %80 = vector.load %arg13[%79, %c0_52] : memref<64x128xf32, #tpu.memory_space<vmem>>, vector<8x128xf32>
      %81 = arith.truncf %78 : vector<8x128xf32> to vector<8x128xbf16>
      %cst_53 = arith.constant dense<0.000000e+00> : vector<32x8xf32>
      %82 = tpu.matmul %62, %81, %cst_53 {dimension_numbers = #tpu.dot_dimension_numbers<[1], [1], [0], [0], [0, 0, 1, 0], [], []>} : vector<32x128xbf16>, vector<8x128xbf16>, vector<32x8xf32> -> vector<32x8xf32>
      %83 = vector.extract_strided_slice %80 {offsets = [0, 0], sizes = [1, 128], strides = [1, 1]} : vector<8x128xf32> to vector<1x128xf32>
      %84 = vector.broadcast %83 : vector<1x128xf32> to vector<16x128xf32>
      %85 = arith.mulf %84, %60 : vector<16x128xf32>
      %86 = math.exp %85 : vector<16x128xf32>
      %87 = vector.extract_strided_slice %80 {offsets = [1, 0], sizes = [1, 128], strides = [1, 1]} : vector<8x128xf32> to vector<1x128xf32>
      %88 = vector.broadcast %87 : vector<1x128xf32> to vector<16x128xf32>
      %89 = arith.mulf %88, %60 : vector<16x128xf32>
      %90 = math.exp %89 : vector<16x128xf32>
      %91 = vector.extract_strided_slice %80 {offsets = [2, 0], sizes = [1, 128], strides = [1, 1]} : vector<8x128xf32> to vector<1x128xf32>
      %92 = vector.broadcast %91 : vector<1x128xf32> to vector<16x128xf32>
      %93 = arith.mulf %92, %60 : vector<16x128xf32>
      %94 = math.exp %93 : vector<16x128xf32>
      %95 = vector.extract_strided_slice %80 {offsets = [3, 0], sizes = [1, 128], strides = [1, 1]} : vector<8x128xf32> to vector<1x128xf32>
      %96 = vector.broadcast %95 : vector<1x128xf32> to vector<16x128xf32>
      %97 = arith.mulf %96, %60 : vector<16x128xf32>
      %98 = math.exp %97 : vector<16x128xf32>
      %99 = vector.extract_strided_slice %80 {offsets = [4, 0], sizes = [1, 128], strides = [1, 1]} : vector<8x128xf32> to vector<1x128xf32>
      %100 = vector.broadcast %99 : vector<1x128xf32> to vector<16x128xf32>
      %101 = arith.mulf %100, %60 : vector<16x128xf32>
      %102 = math.exp %101 : vector<16x128xf32>
      %103 = vector.extract_strided_slice %80 {offsets = [5, 0], sizes = [1, 128], strides = [1, 1]} : vector<8x128xf32> to vector<1x128xf32>
      %104 = vector.broadcast %103 : vector<1x128xf32> to vector<16x128xf32>
      %105 = arith.mulf %104, %60 : vector<16x128xf32>
      %106 = math.exp %105 : vector<16x128xf32>
      %107 = vector.extract_strided_slice %80 {offsets = [6, 0], sizes = [1, 128], strides = [1, 1]} : vector<8x128xf32> to vector<1x128xf32>
      %108 = vector.broadcast %107 : vector<1x128xf32> to vector<16x128xf32>
      %109 = arith.mulf %108, %60 : vector<16x128xf32>
      %110 = math.exp %109 : vector<16x128xf32>
      %111 = vector.extract_strided_slice %80 {offsets = [7, 0], sizes = [1, 128], strides = [1, 1]} : vector<8x128xf32> to vector<1x128xf32>
      %112 = vector.broadcast %111 : vector<1x128xf32> to vector<16x128xf32>
      %113 = arith.mulf %112, %60 : vector<16x128xf32>
      %114 = math.exp %113 : vector<16x128xf32>
      %115 = vector.extract_strided_slice %80 {offsets = [0, 0], sizes = [1, 128], strides = [1, 1]} : vector<8x128xf32> to vector<1x128xf32>
      %116 = vector.extract_strided_slice %78 {offsets = [0, 0], sizes = [1, 128], strides = [1, 1]} : vector<8x128xf32> to vector<1x128xf32>
      %117 = arith.mulf %115, %116 : vector<1x128xf32>
      %118 = vector.extract_strided_slice %80 {offsets = [1, 0], sizes = [1, 128], strides = [1, 1]} : vector<8x128xf32> to vector<1x128xf32>
      %119 = vector.extract_strided_slice %78 {offsets = [1, 0], sizes = [1, 128], strides = [1, 1]} : vector<8x128xf32> to vector<1x128xf32>
      %120 = arith.mulf %118, %119 : vector<1x128xf32>
      %121 = vector.extract_strided_slice %80 {offsets = [2, 0], sizes = [1, 128], strides = [1, 1]} : vector<8x128xf32> to vector<1x128xf32>
      %122 = vector.extract_strided_slice %78 {offsets = [2, 0], sizes = [1, 128], strides = [1, 1]} : vector<8x128xf32> to vector<1x128xf32>
      %123 = arith.mulf %121, %122 : vector<1x128xf32>
      %124 = vector.extract_strided_slice %80 {offsets = [3, 0], sizes = [1, 128], strides = [1, 1]} : vector<8x128xf32> to vector<1x128xf32>
      %125 = vector.extract_strided_slice %78 {offsets = [3, 0], sizes = [1, 128], strides = [1, 1]} : vector<8x128xf32> to vector<1x128xf32>
      %126 = arith.mulf %124, %125 : vector<1x128xf32>
      %127 = vector.extract_strided_slice %80 {offsets = [4, 0], sizes = [1, 128], strides = [1, 1]} : vector<8x128xf32> to vector<1x128xf32>
      %128 = vector.extract_strided_slice %78 {offsets = [4, 0], sizes = [1, 128], strides = [1, 1]} : vector<8x128xf32> to vector<1x128xf32>
      %129 = arith.mulf %127, %128 : vector<1x128xf32>
      %130 = vector.extract_strided_slice %80 {offsets = [5, 0], sizes = [1, 128], strides = [1, 1]} : vector<8x128xf32> to vector<1x128xf32>
      %131 = vector.extract_strided_slice %78 {offsets = [5, 0], sizes = [1, 128], strides = [1, 1]} : vector<8x128xf32> to vector<1x128xf32>
      %132 = arith.mulf %130, %131 : vector<1x128xf32>
      %133 = vector.extract_strided_slice %80 {offsets = [6, 0], sizes = [1, 128], strides = [1, 1]} : vector<8x128xf32> to vector<1x128xf32>
      %134 = vector.extract_strided_slice %78 {offsets = [6, 0], sizes = [1, 128], strides = [1, 1]} : vector<8x128xf32> to vector<1x128xf32>
      %135 = arith.mulf %133, %134 : vector<1x128xf32>
      %136 = vector.extract_strided_slice %80 {offsets = [7, 0], sizes = [1, 128], strides = [1, 1]} : vector<8x128xf32> to vector<1x128xf32>
      %137 = vector.extract_strided_slice %78 {offsets = [7, 0], sizes = [1, 128], strides = [1, 1]} : vector<8x128xf32> to vector<1x128xf32>
      %138 = arith.mulf %136, %137 : vector<1x128xf32>
      %139 = vector.extract_strided_slice %82 {offsets = [0, 0], sizes = [16, 1], strides = [1, 1]} : vector<32x8xf32> to vector<16x1xf32>
      %140 = vector.extract_strided_slice %82 {offsets = [16, 0], sizes = [16, 1], strides = [1, 1]} : vector<32x8xf32> to vector<16x1xf32>
      %141 = arith.mulf %86, %arg17 : vector<16x128xf32>
      %142 = vector.broadcast %117 : vector<1x128xf32> to vector<16x128xf32>
      %143 = vector.broadcast %139 : vector<16x1xf32> to vector<16x128xf32>
      %144 = arith.mulf %142, %143 : vector<16x128xf32>
      %145 = arith.addf %141, %144 : vector<16x128xf32>
      %146 = vector.broadcast %140 : vector<16x1xf32> to vector<16x128xf32>
      %147 = arith.mulf %145, %146 : vector<16x128xf32>
      %cst_54 = arith.constant dense<0.000000e+00> : vector<128xf32>
      %148 = vector.multi_reduction <add>, %147, %cst_54 [0] : vector<16x128xf32> to vector<128xf32>
      %149 = vector.shape_cast %148 : vector<128xf32> to vector<1x128xf32>
      %150 = vector.extract_strided_slice %78 {offsets = [0, 0], sizes = [1, 128], strides = [1, 1]} : vector<8x128xf32> to vector<1x128xf32>
      %151 = arith.mulf %150, %61 : vector<1x128xf32>
      %152 = arith.addf %149, %151 : vector<1x128xf32>
      %c0_i32_55 = arith.constant 0 : i32
      %153 = arith.addi %76, %c0_i32_55 : i32
      %154 = arith.index_cast %153 : i32 to index
      %c0_56 = arith.constant 0 : index
      %155 = vector.load %arg14[%154, %c0_56] : memref<64x128xf32, #tpu.memory_space<vmem>>, vector<1x128xf32>
      tpu.vector_store %arg14[%154, %c0_56], %152 {strides = array<i32>} : memref<64x128xf32, #tpu.memory_space<vmem>>, vector<1x128xf32>,
      %156 = vector.extract_strided_slice %82 {offsets = [0, 1], sizes = [16, 1], strides = [1, 1]} : vector<32x8xf32> to vector<16x1xf32>
      %157 = vector.extract_strided_slice %82 {offsets = [16, 1], sizes = [16, 1], strides = [1, 1]} : vector<32x8xf32> to vector<16x1xf32>
      %158 = arith.mulf %90, %145 : vector<16x128xf32>
      %159 = vector.broadcast %120 : vector<1x128xf32> to vector<16x128xf32>
      %160 = vector.broadcast %156 : vector<16x1xf32> to vector<16x128xf32>
      %161 = arith.mulf %159, %160 : vector<16x128xf32>
      %162 = arith.addf %158, %161 : vector<16x128xf32>
      %163 = vector.broadcast %157 : vector<16x1xf32> to vector<16x128xf32>
      %164 = arith.mulf %162, %163 : vector<16x128xf32>
      %cst_57 = arith.constant dense<0.000000e+00> : vector<128xf32>
      %165 = vector.multi_reduction <add>, %164, %cst_57 [0] : vector<16x128xf32> to vector<128xf32>
      %166 = vector.shape_cast %165 : vector<128xf32> to vector<1x128xf32>
      %167 = vector.extract_strided_slice %78 {offsets = [1, 0], sizes = [1, 128], strides = [1, 1]} : vector<8x128xf32> to vector<1x128xf32>
      %168 = arith.mulf %167, %61 : vector<1x128xf32>
      %169 = arith.addf %166, %168 : vector<1x128xf32>
      %c1_i32_58 = arith.constant 1 : i32
      %170 = arith.addi %76, %c1_i32_58 : i32
      %171 = arith.index_cast %170 : i32 to index
      %c0_59 = arith.constant 0 : index
      %172 = vector.load %arg14[%171, %c0_59] : memref<64x128xf32, #tpu.memory_space<vmem>>, vector<1x128xf32>
      tpu.vector_store %arg14[%171, %c0_59], %169 {strides = array<i32>} : memref<64x128xf32, #tpu.memory_space<vmem>>, vector<1x128xf32>,
      %173 = vector.extract_strided_slice %82 {offsets = [0, 2], sizes = [16, 1], strides = [1, 1]} : vector<32x8xf32> to vector<16x1xf32>
      %174 = vector.extract_strided_slice %82 {offsets = [16, 2], sizes = [16, 1], strides = [1, 1]} : vector<32x8xf32> to vector<16x1xf32>
      %175 = arith.mulf %94, %162 : vector<16x128xf32>
      %176 = vector.broadcast %123 : vector<1x128xf32> to vector<16x128xf32>
      %177 = vector.broadcast %173 : vector<16x1xf32> to vector<16x128xf32>
      %178 = arith.mulf %176, %177 : vector<16x128xf32>
      %179 = arith.addf %175, %178 : vector<16x128xf32>
      %180 = vector.broadcast %174 : vector<16x1xf32> to vector<16x128xf32>
      %181 = arith.mulf %179, %180 : vector<16x128xf32>
      %cst_60 = arith.constant dense<0.000000e+00> : vector<128xf32>
      %182 = vector.multi_reduction <add>, %181, %cst_60 [0] : vector<16x128xf32> to vector<128xf32>
      %183 = vector.shape_cast %182 : vector<128xf32> to vector<1x128xf32>
      %184 = vector.extract_strided_slice %78 {offsets = [2, 0], sizes = [1, 128], strides = [1, 1]} : vector<8x128xf32> to vector<1x128xf32>
      %185 = arith.mulf %184, %61 : vector<1x128xf32>
      %186 = arith.addf %183, %185 : vector<1x128xf32>
      %c2_i32 = arith.constant 2 : i32
      %187 = arith.addi %76, %c2_i32 : i32
      %188 = arith.index_cast %187 : i32 to index
      %c0_61 = arith.constant 0 : index
      %189 = vector.load %arg14[%188, %c0_61] : memref<64x128xf32, #tpu.memory_space<vmem>>, vector<1x128xf32>
      tpu.vector_store %arg14[%188, %c0_61], %186 {strides = array<i32>} : memref<64x128xf32, #tpu.memory_space<vmem>>, vector<1x128xf32>,
      %190 = vector.extract_strided_slice %82 {offsets = [0, 3], sizes = [16, 1], strides = [1, 1]} : vector<32x8xf32> to vector<16x1xf32>
      %191 = vector.extract_strided_slice %82 {offsets = [16, 3], sizes = [16, 1], strides = [1, 1]} : vector<32x8xf32> to vector<16x1xf32>
      %192 = arith.mulf %98, %179 : vector<16x128xf32>
      %193 = vector.broadcast %126 : vector<1x128xf32> to vector<16x128xf32>
      %194 = vector.broadcast %190 : vector<16x1xf32> to vector<16x128xf32>
      %195 = arith.mulf %193, %194 : vector<16x128xf32>
      %196 = arith.addf %192, %195 : vector<16x128xf32>
      %197 = vector.broadcast %191 : vector<16x1xf32> to vector<16x128xf32>
      %198 = arith.mulf %196, %197 : vector<16x128xf32>
      %cst_62 = arith.constant dense<0.000000e+00> : vector<128xf32>
      %199 = vector.multi_reduction <add>, %198, %cst_62 [0] : vector<16x128xf32> to vector<128xf32>
      %200 = vector.shape_cast %199 : vector<128xf32> to vector<1x128xf32>
      %201 = vector.extract_strided_slice %78 {offsets = [3, 0], sizes = [1, 128], strides = [1, 1]} : vector<8x128xf32> to vector<1x128xf32>
      %202 = arith.mulf %201, %61 : vector<1x128xf32>
      %203 = arith.addf %200, %202 : vector<1x128xf32>
      %c3_i32 = arith.constant 3 : i32
      %204 = arith.addi %76, %c3_i32 : i32
      %205 = arith.index_cast %204 : i32 to index
      %c0_63 = arith.constant 0 : index
      %206 = vector.load %arg14[%205, %c0_63] : memref<64x128xf32, #tpu.memory_space<vmem>>, vector<1x128xf32>
      tpu.vector_store %arg14[%205, %c0_63], %203 {strides = array<i32>} : memref<64x128xf32, #tpu.memory_space<vmem>>, vector<1x128xf32>,
      %207 = vector.extract_strided_slice %82 {offsets = [0, 4], sizes = [16, 1], strides = [1, 1]} : vector<32x8xf32> to vector<16x1xf32>
      %208 = vector.extract_strided_slice %82 {offsets = [16, 4], sizes = [16, 1], strides = [1, 1]} : vector<32x8xf32> to vector<16x1xf32>
      %209 = arith.mulf %102, %196 : vector<16x128xf32>
      %210 = vector.broadcast %129 : vector<1x128xf32> to vector<16x128xf32>
      %211 = vector.broadcast %207 : vector<16x1xf32> to vector<16x128xf32>
      %212 = arith.mulf %210, %211 : vector<16x128xf32>
      %213 = arith.addf %209, %212 : vector<16x128xf32>
      %214 = vector.broadcast %208 : vector<16x1xf32> to vector<16x128xf32>
      %215 = arith.mulf %213, %214 : vector<16x128xf32>
      %cst_64 = arith.constant dense<0.000000e+00> : vector<128xf32>
      %216 = vector.multi_reduction <add>, %215, %cst_64 [0] : vector<16x128xf32> to vector<128xf32>
      %217 = vector.shape_cast %216 : vector<128xf32> to vector<1x128xf32>
      %218 = vector.extract_strided_slice %78 {offsets = [4, 0], sizes = [1, 128], strides = [1, 1]} : vector<8x128xf32> to vector<1x128xf32>
      %219 = arith.mulf %218, %61 : vector<1x128xf32>
      %220 = arith.addf %217, %219 : vector<1x128xf32>
      %c4_i32 = arith.constant 4 : i32
      %221 = arith.addi %76, %c4_i32 : i32
      %222 = arith.index_cast %221 : i32 to index
      %c0_65 = arith.constant 0 : index
      %223 = vector.load %arg14[%222, %c0_65] : memref<64x128xf32, #tpu.memory_space<vmem>>, vector<1x128xf32>
      tpu.vector_store %arg14[%222, %c0_65], %220 {strides = array<i32>} : memref<64x128xf32, #tpu.memory_space<vmem>>, vector<1x128xf32>,
      %224 = vector.extract_strided_slice %82 {offsets = [0, 5], sizes = [16, 1], strides = [1, 1]} : vector<32x8xf32> to vector<16x1xf32>
      %225 = vector.extract_strided_slice %82 {offsets = [16, 5], sizes = [16, 1], strides = [1, 1]} : vector<32x8xf32> to vector<16x1xf32>
      %226 = arith.mulf %106, %213 : vector<16x128xf32>
      %227 = vector.broadcast %132 : vector<1x128xf32> to vector<16x128xf32>
      %228 = vector.broadcast %224 : vector<16x1xf32> to vector<16x128xf32>
      %229 = arith.mulf %227, %228 : vector<16x128xf32>
      %230 = arith.addf %226, %229 : vector<16x128xf32>
      %231 = vector.broadcast %225 : vector<16x1xf32> to vector<16x128xf32>
      %232 = arith.mulf %230, %231 : vector<16x128xf32>
      %cst_66 = arith.constant dense<0.000000e+00> : vector<128xf32>
      %233 = vector.multi_reduction <add>, %232, %cst_66 [0] : vector<16x128xf32> to vector<128xf32>
      %234 = vector.shape_cast %233 : vector<128xf32> to vector<1x128xf32>
      %235 = vector.extract_strided_slice %78 {offsets = [5, 0], sizes = [1, 128], strides = [1, 1]} : vector<8x128xf32> to vector<1x128xf32>
      %236 = arith.mulf %235, %61 : vector<1x128xf32>
      %237 = arith.addf %234, %236 : vector<1x128xf32>
      %c5_i32 = arith.constant 5 : i32
      %238 = arith.addi %76, %c5_i32 : i32
      %239 = arith.index_cast %238 : i32 to index
      %c0_67 = arith.constant 0 : index
      %240 = vector.load %arg14[%239, %c0_67] : memref<64x128xf32, #tpu.memory_space<vmem>>, vector<1x128xf32>
      tpu.vector_store %arg14[%239, %c0_67], %237 {strides = array<i32>} : memref<64x128xf32, #tpu.memory_space<vmem>>, vector<1x128xf32>,
      %241 = vector.extract_strided_slice %82 {offsets = [0, 6], sizes = [16, 1], strides = [1, 1]} : vector<32x8xf32> to vector<16x1xf32>
      %242 = vector.extract_strided_slice %82 {offsets = [16, 6], sizes = [16, 1], strides = [1, 1]} : vector<32x8xf32> to vector<16x1xf32>
      %243 = arith.mulf %110, %230 : vector<16x128xf32>
      %244 = vector.broadcast %135 : vector<1x128xf32> to vector<16x128xf32>
      %245 = vector.broadcast %241 : vector<16x1xf32> to vector<16x128xf32>
      %246 = arith.mulf %244, %245 : vector<16x128xf32>
      %247 = arith.addf %243, %246 : vector<16x128xf32>
      %248 = vector.broadcast %242 : vector<16x1xf32> to vector<16x128xf32>
      %249 = arith.mulf %247, %248 : vector<16x128xf32>
      %cst_68 = arith.constant dense<0.000000e+00> : vector<128xf32>
      %250 = vector.multi_reduction <add>, %249, %cst_68 [0] : vector<16x128xf32> to vector<128xf32>
      %251 = vector.shape_cast %250 : vector<128xf32> to vector<1x128xf32>
      %252 = vector.extract_strided_slice %78 {offsets = [6, 0], sizes = [1, 128], strides = [1, 1]} : vector<8x128xf32> to vector<1x128xf32>
      %253 = arith.mulf %252, %61 : vector<1x128xf32>
      %254 = arith.addf %251, %253 : vector<1x128xf32>
      %c6_i32 = arith.constant 6 : i32
      %255 = arith.addi %76, %c6_i32 : i32
      %256 = arith.index_cast %255 : i32 to index
      %c0_69 = arith.constant 0 : index
      %257 = vector.load %arg14[%256, %c0_69] : memref<64x128xf32, #tpu.memory_space<vmem>>, vector<1x128xf32>
      tpu.vector_store %arg14[%256, %c0_69], %254 {strides = array<i32>} : memref<64x128xf32, #tpu.memory_space<vmem>>, vector<1x128xf32>,
      %258 = vector.extract_strided_slice %82 {offsets = [0, 7], sizes = [16, 1], strides = [1, 1]} : vector<32x8xf32> to vector<16x1xf32>
      %259 = vector.extract_strided_slice %82 {offsets = [16, 7], sizes = [16, 1], strides = [1, 1]} : vector<32x8xf32> to vector<16x1xf32>
      %260 = arith.mulf %114, %247 : vector<16x128xf32>
      %261 = vector.broadcast %138 : vector<1x128xf32> to vector<16x128xf32>
      %262 = vector.broadcast %258 : vector<16x1xf32> to vector<16x128xf32>
      %263 = arith.mulf %261, %262 : vector<16x128xf32>
      %264 = arith.addf %260, %263 : vector<16x128xf32>
      %265 = vector.broadcast %259 : vector<16x1xf32> to vector<16x128xf32>
      %266 = arith.mulf %264, %265 : vector<16x128xf32>
      %cst_70 = arith.constant dense<0.000000e+00> : vector<128xf32>
      %267 = vector.multi_reduction <add>, %266, %cst_70 [0] : vector<16x128xf32> to vector<128xf32>
      %268 = vector.shape_cast %267 : vector<128xf32> to vector<1x128xf32>
      %269 = vector.extract_strided_slice %78 {offsets = [7, 0], sizes = [1, 128], strides = [1, 1]} : vector<8x128xf32> to vector<1x128xf32>
      %270 = arith.mulf %269, %61 : vector<1x128xf32>
      %271 = arith.addf %268, %270 : vector<1x128xf32>
      %c7_i32 = arith.constant 7 : i32
      %272 = arith.addi %76, %c7_i32 : i32
      %273 = arith.index_cast %272 : i32 to index
      %c0_71 = arith.constant 0 : index
      %274 = vector.load %arg14[%273, %c0_71] : memref<64x128xf32, #tpu.memory_space<vmem>>, vector<1x128xf32>
      tpu.vector_store %arg14[%273, %c0_71], %271 {strides = array<i32>} : memref<64x128xf32, #tpu.memory_space<vmem>>, vector<1x128xf32>,
      scf.yield %264 : vector<16x128xf32>
    }
    %c8_i32_39 = arith.constant 8 : i32
    %c0_40 = arith.constant 0 : index
    %c0_41 = arith.constant 0 : index
    %66 = vector.load %arg14[%c0_40, %c0_41] : memref<64x128xf32, #tpu.memory_space<vmem>>, vector<64x128xf32>
    %c0_42 = arith.constant 0 : index
    %c0_43 = arith.constant 0 : index
    %67 = vector.load %arg15[%c0_42, %c0_43] : memref<64x128xf32, #tpu.memory_space<vmem>>, vector<64x128xf32>
    %68 = tpu.concatenate %66, %67 in 1 : vector<64x128xf32>, vector<64x128xf32> -> vector<64x256xf32>
    %69 = arith.truncf %68 : vector<64x256xf32> to vector<64x256xbf16>
    %c0_44 = arith.constant 0 : index
    %c0_45 = arith.constant 0 : index
    %70 = vector.load %arg9[%c0_44, %c0_45] : memref<256x128xbf16, #tpu.memory_space<vmem>>, vector<256x128xbf16>
    %cst_46 = arith.constant dense<0.000000e+00> : vector<64x128xf32>
    %71 = tpu.matmul %69, %70, %cst_46 {dimension_numbers = #tpu.dot_dimension_numbers<[1], [0], [0], [1], [0, 0, 1, 1], [], []>} : vector<64x256xbf16>, vector<256x128xbf16>, vector<64x128xf32> -> vector<64x128xf32>
    %c0_47 = arith.constant 0 : index
    %c0_48 = arith.constant 0 : index
    %c0_49 = arith.constant 0 : index
    %72 = vector.load %arg10[%c0_47, %c0_48, %c0_49] : memref<1x64x128xf32, #tpu.memory_space<vmem>>, vector<1x64x128xf32>
    %73 = vector.shape_cast %72 : vector<1x64x128xf32> to vector<64x128xf32>
    %74 = vector.shape_cast %71 : vector<64x128xf32> to vector<1x64x128xf32>
    tpu.vector_store %arg10[%c0_47, %c0_48, %c0_49], %74 {strides = array<i32>} : memref<1x64x128xf32, #tpu.memory_space<vmem>>, vector<1x64x128xf32>,
    return
  }
  func.func @transform_0(%arg0: i32) -> (i32, i32, i32) {
    %c0_i32 = arith.constant 0 : i32
    %c0_i32_0 = arith.constant 0 : i32
    %c0_i32_1 = arith.constant 0 : i32
    return %arg0, %c0_i32, %c0_i32_0 : i32, i32, i32
  }
  func.func @transform_1(%arg0: i32) -> (i32, i32) {
    %c0_i32 = arith.constant 0 : i32
    %c0_i32_0 = arith.constant 0 : i32
    %c0_i32_1 = arith.constant 0 : i32
    return %c0_i32, %c0_i32_0 : i32, i32
  }
  func.func @transform_2(%arg0: i32) -> (i32, i32) {
    %c0_i32 = arith.constant 0 : i32
    %c0_i32_0 = arith.constant 0 : i32
    %c0_i32_1 = arith.constant 0 : i32
    return %c0_i32, %c0_i32_0 : i32, i32
  }
  func.func @transform_3(%arg0: i32) -> (i32, i32) {
    %c0_i32 = arith.constant 0 : i32
    %c0_i32_0 = arith.constant 0 : i32
    %c0_i32_1 = arith.constant 0 : i32
    return %c0_i32, %c0_i32_0 : i32, i32
  }
  func.func @transform_4(%arg0: i32) -> (i32, i32) {
    %c0_i32 = arith.constant 0 : i32
    %c0_i32_0 = arith.constant 0 : i32
    %c0_i32_1 = arith.constant 0 : i32
    return %c0_i32, %c0_i32_0 : i32, i32
  }
  func.func @transform_5(%arg0: i32) -> (i32, i32) {
    %c0_i32 = arith.constant 0 : i32
    %c0_i32_0 = arith.constant 0 : i32
    %c0_i32_1 = arith.constant 0 : i32
    return %c0_i32, %c0_i32_0 : i32, i32
  }
  func.func @transform_6(%arg0: i32) -> (i32, i32) {
    %c0_i32 = arith.constant 0 : i32
    %c0_i32_0 = arith.constant 0 : i32
    %c0_i32_1 = arith.constant 0 : i32
    return %c0_i32, %c0_i32_0 : i32, i32
  }
  func.func @transform_7(%arg0: i32) -> (i32, i32) {
    %c0_i32 = arith.constant 0 : i32
    %c0_i32_0 = arith.constant 0 : i32
    %c0_i32_1 = arith.constant 0 : i32
    return %c0_i32, %c0_i32_0 : i32, i32
  }
  func.func @transform_8(%arg0: i32) -> (i32, i32) {
    %c0_i32 = arith.constant 0 : i32
    %c0_i32_0 = arith.constant 0 : i32
    %c0_i32_1 = arith.constant 0 : i32
    return %c0_i32, %c0_i32_0 : i32, i32
  }
  func.func @transform_9(%arg0: i32) -> (i32, i32, i32) {
    %c0_i32 = arith.constant 0 : i32
    %c0_i32_0 = arith.constant 0 : i32
    %c0_i32_1 = arith.constant 0 : i32
    return %arg0, %c0_i32, %c0_i32_0 : i32, i32, i32
  }
}

</mosaic_0001>

<llo_original>
// kernel: tpu_custom_call.1
$region0: #{tpu_custom_call.1}
  #allocation0 [shape = 'u32[]', space=smem, size = 0x4, offset = 0x4, fixed_abs, tag = 'smem constant byte address 0x4 - core index']
  #allocation1 [shape = 'u32[144,128]{1,0:T(1,128)}', space=vmem, size = 0x12000, scoped, tag = 'internal scratch']
  #allocation2 [shape = 'f32[80,256]{1,0:T(8,128)}', space=vmem, size = 0x14000, scoped, tag = 'scratch operand']
  #allocation3 [shape = 'f32[64,128]{1,0:T(8,128)}', space=vmem, size = 0x8000, scoped, tag = 'scratch operand']
  #allocation4 [shape = 'f32[64,128]{1,0:T(8,128)}', space=vmem, size = 0x8000, scoped, tag = 'scratch operand']
  #allocation5 [shape = 'f32[64,128]{1,0:T(8,128)}', space=vmem, size = 0x8000, scoped, tag = 'scratch operand']
  #allocation6 [shape = 'f32[64,128]{1,0:T(8,128)}', space=vmem, size = 0x8000, scoped, tag = 'scratch operand']
  %s0 = inlined_call_operand.hbm [shape: bf16[2,64,128], index: 0, kind: input, shape index: {}]
  %s1 = inlined_call_operand.hbm [shape: bf16[128,256], index: 1, kind: input, shape index: {}]
  %s2 = inlined_call_operand.hbm [shape: f32[4,256], index: 2, kind: input, shape index: {}]
  %s3 = inlined_call_operand.hbm [shape: bf16[128,128], index: 3, kind: input, shape index: {}]
  %s4 = inlined_call_operand.hbm [shape: bf16[32,128], index: 4, kind: input, shape index: {}]
  %s5 = inlined_call_operand.vmem [shape: f32[1,128], index: 5, kind: input, shape index: {}]
  %s6 = inlined_call_operand.hbm [shape: f32[16,128], index: 6, kind: input, shape index: {}]
  %s7 = inlined_call_operand.vmem [shape: f32[1,128], index: 7, kind: input, shape index: {}]
  %s8 = inlined_call_operand.hbm [shape: bf16[256,128], index: 8, kind: input, shape index: {}]
  %s9 = inlined_call_operand.hbm [shape: f32[2,64,128], index: 9, kind: output, shape index: {}]
  %s10 = sld [smem:[#allocation0]]
  $region104: #{tpu_custom_call.1} parent=0
    _
  %s12 = ssub.s32 1, %s10
  %s13 = scalar_select 0, %s12, %s10
  $region1: #{tpu_custom_call.1} parent=0
    #allocation7 [shape = 'u8[32768]{0}', space=vmem, size = 0x8000, scoped, tag = 'input window, operand 0']
    #allocation8 [shape = 's32[2]{0}', space=sflag, size = 0x8, scoped, tag = 'scoped memory for tpu_custom_call.1']
    #allocation9 [shape = 's32[2]{0}', space=sflag, size = 0x8, scoped, tag = 'scoped memory for tpu_custom_call.1']
    #allocation10 [shape = 'u8[65536]{0}', space=vmem, size = 0x10000, scoped, tag = 'input window, operand 1, single buffered']
    #allocation11 [shape = 's32[1]{0}', space=sflag, size = 0x4, scoped, tag = 'scoped memory for tpu_custom_call.1']
    #allocation12 [shape = 'u8[4096]{0}', space=vmem, size = 0x1000, scoped, tag = 'input window, operand 2, single buffered']
    #allocation13 [shape = 'u8[32768]{0}', space=vmem, size = 0x8000, scoped, tag = 'input window, operand 3, single buffered']
    #allocation14 [shape = 's32[1]{0}', space=sflag, size = 0x4, scoped, tag = 'scoped memory for tpu_custom_call.1']
    #allocation15 [shape = 'u8[8192]{0}', space=vmem, size = 0x2000, scoped, tag = 'input window, operand 4, single buffered']
    #allocation16 [shape = 'u8[8192]{0}', space=vmem, size = 0x2000, scoped, tag = 'input window, operand 6, single buffered']
    #allocation17 [shape = 's32[1]{0}', space=sflag, size = 0x4, scoped, tag = 'scoped memory for tpu_custom_call.1']
    #allocation18 [shape = 'u8[65536]{0}', space=vmem, size = 0x10000, scoped, tag = 'input window, operand 8, single buffered']
    #allocation19 [shape = 'u8[65536]{0}', space=vmem, size = 0x10000, scoped, tag = 'output window, operand 0']
    %14 = vsyncpa [#allocation8], 0
    %s15 = scalar_lea.sflag [#allocation8], 1
    %16 = vsyncpa %s15, 0
    %17 = vsyncpa [#allocation11], 0
    %18 = vsyncpa [#allocation14], 0
    %19 = vsyncpa [#allocation17], 0
    %20 = vsyncpa [#allocation9], 0
    %s21 = scalar_lea.sflag [#allocation9], 1
    %22 = vsyncpa %s21, 0
    loop: start=0, step=1, limit=4
    $region2: #{tpu_custom_call.1} parent=1 // loop_pre_header
      _
    $region3: #{tpu_custom_call.1} parent=1 // loop_header
      %s24 = sphi 0, %s28
      %p25 = scmp.ge.s32.totalorder %s24, 4
      %s34 = sphi 0, %s36
      %s37 = sphi 0, %s34
      %s38 = sphi 0, %s37
      %s54 = sphi 0, %s38
      %s58 = sphi 0, %s58
      %s60 = sphi 0, %s58
      %s61 = sphi 0, %s60
      %s75 = sphi 0, %s61
      %s79 = sphi 0, %s79
      %s81 = sphi 0, %s79
      %s82 = sphi 0, %s81
      %s96 = sphi 0, %s82
      %s100 = sphi 0, %s100
      %s102 = sphi 0, %s100
      %s103 = sphi 0, %s102
      %s117 = sphi 0, %s103
      %s121 = sphi 0, %s121
      %s123 = sphi 0, %s121
      %s124 = sphi 0, %s123
      %s138 = sphi 0, %s124
      %s142 = sphi 0, %s142
      %s144 = sphi 0, %s142
      %s145 = sphi 0, %s144
      %s159 = sphi 0, %s145
      %s163 = sphi 0, %s163
      %s165 = sphi 0, %s163
      %s166 = sphi 0, %s165
      %s180 = sphi 0, %s166
      %s184 = sphi 0, %s184
      %s186 = sphi 0, %s184
      %s187 = sphi 0, %s186
      %s201 = sphi 0, %s187
      %s205 = sphi 0, %s205
      %s207 = sphi 0, %s205
      %s208 = sphi 0, %s207
      %s222 = sphi 0, %s208
      %s228 = sphi 0, %s230
      %s231 = sphi 0, %s228
      %s232 = sphi 0, %s231
      %s248 = sphi 0, %s232
    $region4: #{tpu_custom_call.1} parent=1 // loop_header_branch
      %27 = sbr.rel (%p25) target = $region8
    $region5: #{tpu_custom_call.1} parent=1 // loop_body
      %s29 = ssub.s32 %s24, 1
      %s30 = ssub.s32 %s24, 2
      %s31 = sadd.s32 %s24, 1
      %s32 = ssub.s32 %s24, %s31
      %p33 = scmp.eq.s32.totalorder %s32, 0
      %s35 = sadd.s32 %s34, 1
      %s36 = scalar_select %p33, %s34, %s35
      %p39 = pneg %p33
      %p40 = scmp.eq.s32.totalorder %s24, 1
      %p41 = por %p39, %p40
      %p42 = scmp.ne.s32.totalorder %s34, %s37
      %p43 = scmp.eq.s32.totalorder %s24, 0
      %p44 = por %p42, %p43
      %p45 = scmp.ne.s32.totalorder %s34, %s37
      %p46 = scmp.eq.s32.totalorder %s29, 1
      %p47 = por %p45, %p46
      %p48 = scmp.ne.s32.totalorder %s37, %s38
      %p49 = scmp.eq.s32.totalorder %s29, 0
      %p50 = por %p48, %p49
      %p51 = scmp.ne.s32.totalorder %s37, %s38
      %p52 = scmp.eq.s32.totalorder %s30, 1
      %p53 = por %p51, %p52
      %p55 = scmp.ne.s32.totalorder %s38, %s54
      %p56 = scmp.eq.s32.totalorder %s30, 0
      %p57 = por %p55, %p56
      %s59 = sadd.s32 %s58, 1
      %p62 = scmp.eq.s32.totalorder %s24, 1
      %p63 = scmp.ne.s32.totalorder %s58, %s60
      %p64 = scmp.eq.s32.totalorder %s24, 0
      %p65 = por %p63, %p64
      %p66 = scmp.ne.s32.totalorder %s58, %s60
      %p67 = scmp.eq.s32.totalorder %s29, 1
      %p68 = por %p66, %p67
      %p69 = scmp.ne.s32.totalorder %s60, %s61
      %p70 = scmp.eq.s32.totalorder %s29, 0
      %p71 = por %p69, %p70
      %p72 = scmp.ne.s32.totalorder %s60, %s61
      %p73 = scmp.eq.s32.totalorder %s30, 1
      %p74 = por %p72, %p73
      %p76 = scmp.ne.s32.totalorder %s61, %s75
      %p77 = scmp.eq.s32.totalorder %s30, 0
      %p78 = por %p76, %p77
      %s80 = sadd.s32 %s79, 1
      %p83 = scmp.eq.s32.totalorder %s24, 1
      %p84 = scmp.ne.s32.totalorder %s79, %s81
      %p85 = scmp.eq.s32.totalorder %s24, 0
      %p86 = por %p84, %p85
      %p87 = scmp.ne.s32.totalorder %s79, %s81
      %p88 = scmp.eq.s32.totalorder %s29, 1
      %p89 = por %p87, %p88
      %p90 = scmp.ne.s32.totalorder %s81, %s82
      %p91 = scmp.eq.s32.totalorder %s29, 0
      %p92 = por %p90, %p91
      %p93 = scmp.ne.s32.totalorder %s81, %s82
      %p94 = scmp.eq.s32.totalorder %s30, 1
      %p95 = por %p93, %p94
      %p97 = scmp.ne.s32.totalorder %s82, %s96
      %p98 = scmp.eq.s32.totalorder %s30, 0
      %p99 = por %p97, %p98
      %s101 = sadd.s32 %s100, 1
      %p104 = scmp.eq.s32.totalorder %s24, 1
      %p105 = scmp.ne.s32.totalorder %s100, %s102
      %p106 = scmp.eq.s32.totalorder %s24, 0
      %p107 = por %p105, %p106
      %p108 = scmp.ne.s32.totalorder %s100, %s102
      %p109 = scmp.eq.s32.totalorder %s29, 1
      %p110 = por %p108, %p109
      %p111 = scmp.ne.s32.totalorder %s102, %s103
      %p112 = scmp.eq.s32.totalorder %s29, 0
      %p113 = por %p111, %p112
      %p114 = scmp.ne.s32.totalorder %s102, %s103
      %p115 = scmp.eq.s32.totalorder %s30, 1
      %p116 = por %p114, %p115
      %p118 = scmp.ne.s32.totalorder %s103, %s117
      %p119 = scmp.eq.s32.totalorder %s30, 0
      %p120 = por %p118, %p119
      %s122 = sadd.s32 %s121, 1
      %p125 = scmp.eq.s32.totalorder %s24, 1
      %p126 = scmp.ne.s32.totalorder %s121, %s123
      %p127 = scmp.eq.s32.totalorder %s24, 0
      %p128 = por %p126, %p127
      %p129 = scmp.ne.s32.totalorder %s121, %s123
      %p130 = scmp.eq.s32.totalorder %s29, 1
      %p131 = por %p129, %p130
      %p132 = scmp.ne.s32.totalorder %s123, %s124
      %p133 = scmp.eq.s32.totalorder %s29, 0
      %p134 = por %p132, %p133
      %p135 = scmp.ne.s32.totalorder %s123, %s124
      %p136 = scmp.eq.s32.totalorder %s30, 1
      %p137 = por %p135, %p136
      %p139 = scmp.ne.s32.totalorder %s124, %s138
      %p140 = scmp.eq.s32.totalorder %s30, 0
      %p141 = por %p139, %p140
      %s143 = sadd.s32 %s142, 1
      %p146 = scmp.eq.s32.totalorder %s24, 1
      %p147 = scmp.ne.s32.totalorder %s142, %s144
      %p148 = scmp.eq.s32.totalorder %s24, 0
      %p149 = por %p147, %p148
      %p150 = scmp.ne.s32.totalorder %s142, %s144
      %p151 = scmp.eq.s32.totalorder %s29, 1
      %p152 = por %p150, %p151
      %p153 = scmp.ne.s32.totalorder %s144, %s145
      %p154 = scmp.eq.s32.totalorder %s29, 0
      %p155 = por %p153, %p154
      %p156 = scmp.ne.s32.totalorder %s144, %s145
      %p157 = scmp.eq.s32.totalorder %s30, 1
      %p158 = por %p156, %p157
      %p160 = scmp.ne.s32.totalorder %s145, %s159
      %p161 = scmp.eq.s32.totalorder %s30, 0
      %p162 = por %p160, %p161
      %s164 = sadd.s32 %s163, 1
      %p167 = scmp.eq.s32.totalorder %s24, 1
      %p168 = scmp.ne.s32.totalorder %s163, %s165
      %p169 = scmp.eq.s32.totalorder %s24, 0
      %p170 = por %p168, %p169
      %p171 = scmp.ne.s32.totalorder %s163, %s165
      %p172 = scmp.eq.s32.totalorder %s29, 1
      %p173 = por %p171, %p172
      %p174 = scmp.ne.s32.totalorder %s165, %s166
      %p175 = scmp.eq.s32.totalorder %s29, 0
      %p176 = por %p174, %p175
      %p177 = scmp.ne.s32.totalorder %s165, %s166
      %p178 = scmp.eq.s32.totalorder %s30, 1
      %p179 = por %p177, %p178
      %p181 = scmp.ne.s32.totalorder %s166, %s180
      %p182 = scmp.eq.s32.totalorder %s30, 0
      %p183 = por %p181, %p182
      %s185 = sadd.s32 %s184, 1
      %p188 = scmp.eq.s32.totalorder %s24, 1
      %p189 = scmp.ne.s32.totalorder %s184, %s186
      %p190 = scmp.eq.s32.totalorder %s24, 0
      %p191 = por %p189, %p190
      %p192 = scmp.ne.s32.totalorder %s184, %s186
      %p193 = scmp.eq.s32.totalorder %s29, 1
      %p194 = por %p192, %p193
      %p195 = scmp.ne.s32.totalorder %s186, %s187
      %p196 = scmp.eq.s32.totalorder %s29, 0
      %p197 = por %p195, %p196
      %p198 = scmp.ne.s32.totalorder %s186, %s187
      %p199 = scmp.eq.s32.totalorder %s30, 1
      %p200 = por %p198, %p199
      %p202 = scmp.ne.s32.totalorder %s187, %s201
      %p203 = scmp.eq.s32.totalorder %s30, 0
      %p204 = por %p202, %p203
      %s206 = sadd.s32 %s205, 1
      %p209 = scmp.eq.s32.totalorder %s24, 1
      %p210 = scmp.ne.s32.totalorder %s205, %s207
      %p211 = scmp.eq.s32.totalorder %s24, 0
      %p212 = por %p210, %p211
      %p213 = scmp.ne.s32.totalorder %s205, %s207
      %p214 = scmp.eq.s32.totalorder %s29, 1
      %p215 = por %p213, %p214
      %p216 = scmp.ne.s32.totalorder %s207, %s208
      %p217 = scmp.eq.s32.totalorder %s29, 0
      %p218 = por %p216, %p217
      %p219 = scmp.ne.s32.totalorder %s207, %s208
      %p220 = scmp.eq.s32.totalorder %s30, 1
      %p221 = por %p219, %p220
      %p223 = scmp.ne.s32.totalorder %s208, %s222
      %p224 = scmp.eq.s32.totalorder %s30, 0
      %p225 = por %p223, %p224
      %s226 = ssub.s32 %s24, %s31
      %p227 = scmp.eq.s32.totalorder %s226, 0
      %s229 = sadd.s32 %s228, 1
      %s230 = scalar_select %p227, %s228, %s229
      %p233 = pneg %p227
      %p234 = scmp.eq.s32.totalorder %s24, 1
      %p235 = por %p233, %p234
      %p236 = scmp.ne.s32.totalorder %s228, %s231
      %p237 = scmp.eq.s32.totalorder %s24, 0
      %p238 = por %p236, %p237
      %p239 = scmp.ne.s32.totalorder %s228, %s231
      %p240 = scmp.eq.s32.totalorder %s29, 1
      %p241 = por %p239, %p240
      %p242 = scmp.ne.s32.totalorder %s231, %s232
      %p243 = scmp.eq.s32.totalorder %s29, 0
      %p244 = por %p242, %p243
      %p245 = scmp.ne.s32.totalorder %s231, %s232
      %p246 = scmp.eq.s32.totalorder %s30, 1
      %p247 = por %p245, %p246
      %p249 = scmp.ne.s32.totalorder %s232, %s248
      %p250 = scmp.eq.s32.totalorder %s30, 0
      %p251 = por %p249, %p250
      %p252 = scmp.le.s32.totalorder 1, %s24
      %p253 = scmp.lt.s32.totalorder %s24, 3
      %p254 = pnand %p252, %p253
      %p255 = pneg %p254
      // Predicated region
      $region9: #{tpu_custom_call.1} parent=5 // pred_check
        _
      $region10: #{tpu_custom_call.1} parent=5 // pred_check_branch
        %257 = sbr.rel (%p254) target = $region12
      $region11: #{tpu_custom_call.1} parent=5 // pred_region
        %s258 = ssub.s32 %s24, 1
        // Predicated region
        $region13: #{tpu_custom_call.1} parent=11 // pred_check
          %p259 = pneg %p71
        $region14: #{tpu_custom_call.1} parent=11 // pred_check_branch
          %261 = sbr.rel (%p259) target = $region16
        $region15: #{tpu_custom_call.1} parent=11 // pred_region
          %s263 = ssub.s32 2048, 2048
          %264 = vsyncadd [#allocation11], %s263
          %s265 = sshll.u32 [#allocation10], 4
          %s266 = int_to_ptr.vmem [resolvable:$true] %s265
          %271 = dma.hbm_to_vmem [thread:$0]  %s1, 2048, %s266, [#allocation11], 128, 128, 8
        $region16: #{tpu_custom_call.1} parent=11 // pred_fallthru
          _
        // Predicated region
        $region17: #{tpu_custom_call.1} parent=11 // pred_check
          %p272 = pneg %p92
        $region18: #{tpu_custom_call.1} parent=11 // pred_check_branch
          %274 = sbr.rel (%p272) target = $region20
        $region19: #{tpu_custom_call.1} parent=11 // pred_region
          %s276 = ssub.s32 128, 128
          %277 = vsyncadd [#allocation11], %s276
          %s279 = sshll.u32 [#allocation12], 4
          %s280 = int_to_ptr.vmem [resolvable:$true] %s279
          %282 = dma.hbm_to_vmem [thread:$0]  %s2, 128, %s280, [#allocation11]
        $region20: #{tpu_custom_call.1} parent=11 // pred_fallthru
          _
        // Predicated region
        $region21: #{tpu_custom_call.1} parent=11 // pred_check
          %p283 = pneg %p113
        $region22: #{tpu_custom_call.1} parent=11 // pred_check_branch
          %285 = sbr.rel (%p283) target = $region24
        $region23: #{tpu_custom_call.1} parent=11 // pred_region
          %s287 = ssub.s32 1024, 1024
          %288 = vsyncadd [#allocation14], %s287
          %s289 = sshll.u32 [#allocation13], 4
          %s290 = int_to_ptr.vmem [resolvable:$true] %s289
          %295 = dma.hbm_to_vmem [thread:$0]  %s3, 1024, %s290, [#allocation14], 64, 64, 4
        $region24: #{tpu_custom_call.1} parent=11 // pred_fallthru
          _
        // Predicated region
        $region25: #{tpu_custom_call.1} parent=11 // pred_check
          %p296 = pneg %p134
        $region26: #{tpu_custom_call.1} parent=11 // pred_check_branch
          %298 = sbr.rel (%p296) target = $region28
        $region27: #{tpu_custom_call.1} parent=11 // pred_region
          %s300 = ssub.s32 256, 256
          %301 = vsyncadd [#allocation14], %s300
          %s302 = sshll.u32 [#allocation15], 4
          %s303 = int_to_ptr.vmem [resolvable:$true] %s302
          %308 = dma.hbm_to_vmem [thread:$0]  %s4, 256, %s303, [#allocation14], 64, 64, 4
        $region28: #{tpu_custom_call.1} parent=11 // pred_fallthru
          _
        // Predicated region
        $region29: #{tpu_custom_call.1} parent=11 // pred_check
          %p309 = pneg %p155
        $region30: #{tpu_custom_call.1} parent=11 // pred_check_branch
          %311 = sbr.rel (%p309) target = $region32
        $region31: #{tpu_custom_call.1} parent=11 // pred_region
          _
        $region32: #{tpu_custom_call.1} parent=11 // pred_fallthru
          _
        // Predicated region
        $region33: #{tpu_custom_call.1} parent=11 // pred_check
          %p312 = pneg %p176
        $region34: #{tpu_custom_call.1} parent=11 // pred_check_branch
          %314 = sbr.rel (%p312) target = $region36
        $region35: #{tpu_custom_call.1} parent=11 // pred_region
          %s316 = ssub.s32 256, 256
          %317 = vsyncadd [#allocation17], %s316
          %s318 = sshll.u32 [#allocation16], 4
          %s319 = int_to_ptr.vmem [resolvable:$true] %s318
          %324 = dma.hbm_to_vmem [thread:$0]  %s6, 256, %s319, [#allocation17], 128, 128, 8
        $region36: #{tpu_custom_call.1} parent=11 // pred_fallthru
          _
        // Predicated region
        $region37: #{tpu_custom_call.1} parent=11 // pred_check
          %p325 = pneg %p197
        $region38: #{tpu_custom_call.1} parent=11 // pred_check_branch
          %327 = sbr.rel (%p325) target = $region40
        $region39: #{tpu_custom_call.1} parent=11 // pred_region
          _
        $region40: #{tpu_custom_call.1} parent=11 // pred_fallthru
          _
        // Predicated region
        $region41: #{tpu_custom_call.1} parent=11 // pred_check
          %p328 = pneg %p218
        $region42: #{tpu_custom_call.1} parent=11 // pred_check_branch
          %330 = sbr.rel (%p328) target = $region44
        $region43: #{tpu_custom_call.1} parent=11 // pred_region
          %s332 = ssub.s32 2048, 2048
          %333 = vsyncadd [#allocation17], %s332
          %s334 = sshll.u32 [#allocation18], 4
          %s335 = int_to_ptr.vmem [resolvable:$true] %s334
          %340 = dma.hbm_to_vmem [thread:$0]  %s8, 2048, %s335, [#allocation17], 64, 64, 4
        $region44: #{tpu_custom_call.1} parent=11 // pred_fallthru
          _
      $region12: #{tpu_custom_call.1} parent=5 // pred_fallthru
        _
      %p341 = scmp.lt.s32.totalorder %s24, 2
      // Predicated region
      $region45: #{tpu_custom_call.1} parent=5 // pred_check
        %p342 = pneg %p341
      $region46: #{tpu_custom_call.1} parent=5 // pred_check_branch
        %344 = sbr.rel (%p342) target = $region48
      $region47: #{tpu_custom_call.1} parent=5 // pred_region
        // Predicated region
        $region49: #{tpu_custom_call.1} parent=47 // pred_check
          %p345 = pneg %p44
        $region50: #{tpu_custom_call.1} parent=47 // pred_check_branch
          %347 = sbr.rel (%p345) target = $region52
        $region51: #{tpu_custom_call.1} parent=47 // pred_region
          %s348 = sand.u32 %s34, 1
          %s349 = scalar_lea.sflag [#allocation8], %s348
          %s350 = sand.u32 %s34, 1
          %s351 = smul.addr %s350, 32
          %s352 = scalar_lea.vmem [#allocation7], %s351
          %s354 = ssub.s32 512, 512
          %355 = vsyncadd %s349, %s354
          %s356 = smul.addr %s24, 8
          %s357 = smul.addr %s356, 64
          %s358 = scalar_lea.hbm %s0, %s357
          %s359 = sshll.u32 %s352, 4
          %s360 = int_to_ptr.vmem [resolvable:$true] %s359
          %365 = dma.hbm_to_vmem [thread:$0]  %s358, 512, %s360, %s349, 64, 64, 4
        $region52: #{tpu_custom_call.1} parent=47 // pred_fallthru
          _
      $region48: #{tpu_custom_call.1} parent=5 // pred_fallthru
        _
      %p366 = scmp.le.s32.totalorder 1, %s24
      %p367 = scmp.lt.s32.totalorder %s24, 3
      %p368 = pnand %p366, %p367
      %p369 = pneg %p368
      // Predicated region
      $region53: #{tpu_custom_call.1} parent=5 // pred_check
        _
      $region54: #{tpu_custom_call.1} parent=5 // pred_check_branch
        %371 = sbr.rel (%p368) target = $region56
      $region55: #{tpu_custom_call.1} parent=5 // pred_region
        %s372 = ssub.s32 %s24, 1
        %s373 = sand.u32 %s37, 1
        %s374 = scalar_lea.sflag [#allocation8], %s373
        %s375 = sand.u32 %s37, 1
        %s376 = smul.addr %s375, 32
        %s377 = scalar_lea.vmem [#allocation7], %s376
        // Predicated region
        $region57: #{tpu_custom_call.1} parent=55 // pred_check
          %p378 = pneg %p50
        $region58: #{tpu_custom_call.1} parent=55 // pred_check_branch
          %380 = sbr.rel (%p378) target = $region60
        $region59: #{tpu_custom_call.1} parent=55 // pred_region
          %381 = dma.done %s374, 512
        $region60: #{tpu_custom_call.1} parent=55 // pred_fallthru
          _
        // Predicated region
        $region61: #{tpu_custom_call.1} parent=55 // pred_check
          %p382 = pneg %p71
        $region62: #{tpu_custom_call.1} parent=55 // pred_check_branch
          %384 = sbr.rel (%p382) target = $region64
        $region63: #{tpu_custom_call.1} parent=55 // pred_region
          %385 = dma.done [#allocation11], 2048
        $region64: #{tpu_custom_call.1} parent=55 // pred_fallthru
          _
        // Predicated region
        $region65: #{tpu_custom_call.1} parent=55 // pred_check
          %p386 = pneg %p92
        $region66: #{tpu_custom_call.1} parent=55 // pred_check_branch
          %388 = sbr.rel (%p386) target = $region68
        $region67: #{tpu_custom_call.1} parent=55 // pred_region
          %389 = dma.done [#allocation11], 128
        $region68: #{tpu_custom_call.1} parent=55 // pred_fallthru
          _
        // Predicated region
        $region69: #{tpu_custom_call.1} parent=55 // pred_check
          %p390 = pneg %p113
        $region70: #{tpu_custom_call.1} parent=55 // pred_check_branch
          %392 = sbr.rel (%p390) target = $region72
        $region71: #{tpu_custom_call.1} parent=55 // pred_region
          %393 = dma.done [#allocation14], 1024
        $region72: #{tpu_custom_call.1} parent=55 // pred_fallthru
          _
        // Predicated region
        $region73: #{tpu_custom_call.1} parent=55 // pred_check
          %p394 = pneg %p134
        $region74: #{tpu_custom_call.1} parent=55 // pred_check_branch
          %396 = sbr.rel (%p394) target = $region76
        $region75: #{tpu_custom_call.1} parent=55 // pred_region
          %397 = dma.done [#allocation14], 256
        $region76: #{tpu_custom_call.1} parent=55 // pred_fallthru
          _
        // Predicated region
        $region77: #{tpu_custom_call.1} parent=55 // pred_check
          %p398 = pneg %p176
        $region78: #{tpu_custom_call.1} parent=55 // pred_check_branch
          %400 = sbr.rel (%p398) target = $region80
        $region79: #{tpu_custom_call.1} parent=55 // pred_region
          %401 = dma.done [#allocation17], 256
        $region80: #{tpu_custom_call.1} parent=55 // pred_fallthru
          _
        // Predicated region
        $region81: #{tpu_custom_call.1} parent=55 // pred_check
          %p402 = pneg %p218
        $region82: #{tpu_custom_call.1} parent=55 // pred_check_branch
          %404 = sbr.rel (%p402) target = $region84
        $region83: #{tpu_custom_call.1} parent=55 // pred_region
          %405 = dma.done [#allocation17], 2048
        $region84: #{tpu_custom_call.1} parent=55 // pred_fallthru
          _
        %s406 = sand.u32 %s37, 1
        %s407 = scalar_lea.sflag [#allocation8], %s406
        %s408 = sand.u32 %s37, 1
        %s409 = smul.addr %s408, 32
        %s410 = scalar_lea.vmem [#allocation7], %s409
        %p411 = pneg %p50
        %p412 = pneg %p47
        %p413 = pneg %p71
        %p414 = pneg %p68
        %p415 = pneg %p92
        %p416 = pneg %p89
        %p417 = pneg %p113
        %p418 = pneg %p110
        %p419 = pneg %p134
        %p420 = pneg %p131
        %p421 = pneg %p155
        %p422 = pneg %p152
        %p423 = pneg %p176
        %p424 = pneg %p173
        %p425 = pneg %p197
        %p426 = pneg %p194
        %p427 = pneg %p218
        %p428 = pneg %p215
        %p429 = pneg %p244
        %p430 = pneg %p241
        %s431 = sand.u32 %s231, 1
        %s432 = scalar_lea.sflag [#allocation9], %s431
        %s433 = sand.u32 %s231, 1
        %s434 = smul.addr %s433, 64
        %s435 = scalar_lea.vmem [#allocation19], %s434
        %v437 = vld [vmem:[%s377] sm:$0xf]
        %v438 = vld [vmem:[%s377 + $0x4] sm:$0xf]
        %v439 = vld [vmem:[%s377 + $0x8] sm:$0xf]
        %v440 = vld [vmem:[%s377 + $0xc] sm:$0xf]
        %v441 = vld [vmem:[%s377 + $0x10] sm:$0xf]
        %v442 = vld [vmem:[%s377 + $0x14] sm:$0xf]
        %v443 = vld [vmem:[%s377 + $0x18] sm:$0xf]
        %v444 = vld [vmem:[%s377 + $0x1c] sm:$0xf]
        %v445 = vld [vmem:[#allocation10] sm:$0xff]
        %v446 = vld [vmem:[#allocation10 + $0x8] sm:$0xff]
        %v447 = vld [vmem:[#allocation10 + $0x10] sm:$0xff]
        %v448 = vld [vmem:[#allocation10 + $0x18] sm:$0xff]
        %v449 = vld [vmem:[#allocation10 + $0x20] sm:$0xff]
        %v450 = vld [vmem:[#allocation10 + $0x28] sm:$0xff]
        %v451 = vld [vmem:[#allocation10 + $0x30] sm:$0xff]
        %v452 = vld [vmem:[#allocation10 + $0x38] sm:$0xff]
        %v453 = vld [vmem:[#allocation10 + $0x40] sm:$0xff]
        %v454 = vld [vmem:[#allocation10 + $0x48] sm:$0xff]
        %v455 = vld [vmem:[#allocation10 + $0x50] sm:$0xff]
        %v456 = vld [vmem:[#allocation10 + $0x58] sm:$0xff]
        %v457 = vld [vmem:[#allocation10 + $0x60] sm:$0xff]
        %v458 = vld [vmem:[#allocation10 + $0x68] sm:$0xff]
        %v459 = vld [vmem:[#allocation10 + $0x70] sm:$0xff]
        %v460 = vld [vmem:[#allocation10 + $0x78] sm:$0xff]
        %v469 = vunpack.c.l.b16 %v437
        %v470 = vunpack.c.l.b16 %v438
        %v471 = vunpack.c.l.b16 %v439
        %v472 = vunpack.c.l.b16 %v440
        %v473 = vunpack.c.l.b16 %v441
        %v474 = vunpack.c.l.b16 %v442
        %v475 = vunpack.c.l.b16 %v443
        %v476 = vunpack.c.l.b16 %v444
        %v477 = vpack.c.b16 %v470, %v469
        %v478 = vpack.c.b16 %v472, %v471
        %v479 = vpack.c.b16 %v474, %v473
        %v480 = vpack.c.b16 %v476, %v475
        %v501 = vunpack.c.l.b16 %v445
        %v502 = vunpack.c.h.b16 %v445
        %v503 = vunpack.c.l.b16 %v446
        %v504 = vunpack.c.h.b16 %v446
        %v505 = vunpack.c.l.b16 %v447
        %v506 = vunpack.c.h.b16 %v447
        %v507 = vunpack.c.l.b16 %v448
        %v508 = vunpack.c.h.b16 %v448
        %v509 = vunpack.c.l.b16 %v449
        %v510 = vunpack.c.h.b16 %v449
        %v511 = vunpack.c.l.b16 %v450
        %v512 = vunpack.c.h.b16 %v450
        %v513 = vunpack.c.l.b16 %v451
        %v514 = vunpack.c.h.b16 %v451
        %v515 = vunpack.c.l.b16 %v452
        %v516 = vunpack.c.h.b16 %v452
        %v517 = vunpack.c.l.b16 %v453
        %v518 = vunpack.c.h.b16 %v453
        %v519 = vunpack.c.l.b16 %v454
        %v520 = vunpack.c.h.b16 %v454
        %v521 = vunpack.c.l.b16 %v455
        %v522 = vunpack.c.h.b16 %v455
        %v523 = vunpack.c.l.b16 %v456
        %v524 = vunpack.c.h.b16 %v456
        %v525 = vunpack.c.l.b16 %v457
        %v526 = vunpack.c.h.b16 %v457
        %v527 = vunpack.c.l.b16 %v458
        %v528 = vunpack.c.h.b16 %v458
        %v529 = vunpack.c.l.b16 %v459
        %v530 = vunpack.c.h.b16 %v459
        %v531 = vunpack.c.l.b16 %v460
        %v532 = vunpack.c.h.b16 %v460
        %v533 = vpack.c.b16 %v503, %v501
        %v534 = vpack.c.b16 %v504, %v502
        %v535 = vpack.c.b16 %v507, %v505
        %v536 = vpack.c.b16 %v508, %v506
        %v537 = vpack.c.b16 %v511, %v509
        %v538 = vpack.c.b16 %v512, %v510
        %v539 = vpack.c.b16 %v515, %v513
        %v540 = vpack.c.b16 %v516, %v514
        %v541 = vpack.c.b16 %v519, %v517
        %v542 = vpack.c.b16 %v520, %v518
        %v543 = vpack.c.b16 %v523, %v521
        %v544 = vpack.c.b16 %v524, %v522
        %v545 = vpack.c.b16 %v527, %v525
        %v546 = vpack.c.b16 %v528, %v526
        %v547 = vpack.c.b16 %v531, %v529
        %v548 = vpack.c.b16 %v532, %v530
        %565 = vmatprep.subr.bf16.mxu0 %v548
        %566 = vmatpush1.bf16.msra.mxu0 %v547
        %567 = vmatprep.subr.bf16.mxu0 %v546
        %568 = vmatpush1.bf16.msra.mxu0 %v545
        %569 = vmatprep.subr.bf16.mxu0 %v544
        %570 = vmatpush1.bf16.msra.mxu0 %v543
        %571 = vmatprep.subr.bf16.mxu0 %v542
        %572 = vmatpush1.bf16.msra.mxu0 %v541
        %573 = vmatprep.subr.bf16.mxu0 %v540
        %574 = vmatpush1.bf16.msra.mxu0 %v539
        %575 = vmatprep.subr.bf16.mxu0 %v538
        %576 = vmatpush1.bf16.msra.mxu0 %v537
        %577 = vmatprep.subr.bf16.mxu0 %v536
        %578 = vmatpush1.bf16.msra.mxu0 %v535
        %579 = vmatprep.subr.bf16.mxu0 %v534
        %580 = vmatpush1.bf16.msra.mxu0 %v533
        %581 = vmatprep.subr.bf16.mxu0 0
        %582 = vmatpush2.bf16.msra.mxu0 0
        %583 = vmatprep.subr.bf16.mxu0 0
        %584 = vmatpush2.bf16.msra.mxu0 0
        %585 = vmatprep.subr.bf16.mxu0 0
        %586 = vmatpush2.bf16.msra.mxu0 0
        %587 = vmatprep.subr.bf16.mxu0 0
        %588 = vmatpush2.bf16.msra.mxu0 0
        %589 = vmatprep.subr.bf16.mxu0 0
        %590 = vmatpush2.bf16.msra.mxu0 0
        %591 = vmatprep.subr.bf16.mxu0 0
        %592 = vmatpush2.bf16.msra.mxu0 0
        %593 = vmatprep.subr.bf16.mxu0 0
        %594 = vmatpush2.bf16.msra.mxu0 0
        %595 = vmatprep.subr.bf16.mxu0 0
        %596 = vmatpush2.bf16.msra.mxu0 0
        %597 = vmatprep.mubr.bf16.mxu0 0
        %598 = vmatmul.mubr.bf16.gmra.mxu0 %v477
        %v599 = vpop.f32.mrf.mxu0
        %v600 = vadd.f32 0.0, %v599
        %v601 = vpop.f32.mrf.mxu0
        %v602 = vadd.f32 0.0, %v601
        %v603 = vpop.f32.mrf.mxu0
        %v604 = vadd.f32 0.0, %v603
        %v605 = vpop.f32.mrf.mxu0
        %v606 = vadd.f32 0.0, %v605
        %607 = vmatprep.mubr.bf16.mxu0 0
        %608 = vmatmul.mubr.bf16.gmra.mxu0 %v478
        %v609 = vpop.f32.mrf.mxu0
        %v610 = vadd.f32 0.0, %v609
        %v611 = vpop.f32.mrf.mxu0
        %v612 = vadd.f32 0.0, %v611
        %v613 = vpop.f32.mrf.mxu0
        %v614 = vadd.f32 0.0, %v613
        %v615 = vpop.f32.mrf.mxu0
        %v616 = vadd.f32 0.0, %v615
        %617 = vmatprep.mubr.bf16.mxu0 0
        %618 = vmatmul.mubr.bf16.gmra.mxu0 %v479
        %v619 = vpop.f32.mrf.mxu0
        %v620 = vadd.f32 0.0, %v619
        %v621 = vpop.f32.mrf.mxu0
        %v622 = vadd.f32 0.0, %v621
        %v623 = vpop.f32.mrf.mxu0
        %v624 = vadd.f32 0.0, %v623
        %v625 = vpop.f32.mrf.mxu0
        %v626 = vadd.f32 0.0, %v625
        %627 = vmatprep.mubr.bf16.mxu0 0
        %628 = vmatmul.mubr.bf16.gmra.mxu0 %v480
        %v629 = vpop.f32.mrf.mxu0
        %v630 = vadd.f32 0.0, %v629
        %v631 = vpop.f32.mrf.mxu0
        %v632 = vadd.f32 0.0, %v631
        %v633 = vpop.f32.mrf.mxu0
        %v634 = vadd.f32 0.0, %v633
        %v635 = vpop.f32.mrf.mxu0
        %v636 = vadd.f32 0.0, %v635
        %637 = vdwg.mxu0
        %638 = vst [vmem:[#allocation2] sm:$0xff] 0.0
        %639 = vst [vmem:[#allocation2 + $0x8] sm:$0xff] 0.0
        %640 = vst [vmem:[#allocation2 + $0x90] sm:$0xff] 0.0
        %641 = vst [vmem:[#allocation2 + $0x98] sm:$0xff] 0.0
        %642 = vst [vmem:[#allocation2 + $0x10] sm:$0xff] %v600
        %643 = vst [vmem:[#allocation2 + $0x18] sm:$0xff] %v602
        %644 = vst [vmem:[#allocation2 + $0x20] sm:$0xff] %v604
        %645 = vst [vmem:[#allocation2 + $0x28] sm:$0xff] %v606
        %646 = vst [vmem:[#allocation2 + $0x30] sm:$0xff] %v610
        %647 = vst [vmem:[#allocation2 + $0x38] sm:$0xff] %v612
        %648 = vst [vmem:[#allocation2 + $0x40] sm:$0xff] %v614
        %649 = vst [vmem:[#allocation2 + $0x48] sm:$0xff] %v616
        %650 = vst [vmem:[#allocation2 + $0x50] sm:$0xff] %v620
        %651 = vst [vmem:[#allocation2 + $0x58] sm:$0xff] %v622
        %652 = vst [vmem:[#allocation2 + $0x60] sm:$0xff] %v624
        %653 = vst [vmem:[#allocation2 + $0x68] sm:$0xff] %v626
        %654 = vst [vmem:[#allocation2 + $0x70] sm:$0xff] %v630
        %655 = vst [vmem:[#allocation2 + $0x78] sm:$0xff] %v632
        %656 = vst [vmem:[#allocation2 + $0x80] sm:$0xff] %v634
        %657 = vst [vmem:[#allocation2 + $0x88] sm:$0xff] %v636
        %s658 = scalar_lea.vmem [#allocation12], 1
        %v659 = vld [vmem:[%s658] ss:$4 sm:$0x3]
        %v661 = vlaneseq
        %v662 = vshrl.u32 %v661, 7
        %v663 = vsub.s32 0, %v662
        %v664 = vrot.slane %v659, %v663
        %v665 = vlaneseq
        %v666 = vshrl.u32 %v665, 7
        %v667 = vsub.s32 1, %v666
        %v668 = vrot.slane %v659, %v667
        %v671 = vmul.f32 %v600, %v664
        %v672 = vmul.f32 %v602, %v668
        %v673 = vmul.f32 %v604, %v664
        %v674 = vmul.f32 %v606, %v668
        %v675 = vmul.f32 %v610, %v664
        %v676 = vmul.f32 %v612, %v668
        %v677 = vmul.f32 %v614, %v664
        %v678 = vmul.f32 %v616, %v668
        %v679 = vmul.f32 %v620, %v664
        %v680 = vmul.f32 %v622, %v668
        %v681 = vmul.f32 %v624, %v664
        %v682 = vmul.f32 %v626, %v668
        %v683 = vmul.f32 %v630, %v664
        %v684 = vmul.f32 %v632, %v668
        %v685 = vmul.f32 %v634, %v664
        %v686 = vmul.f32 %v636, %v668
        %v687 = vld [vmem:[#allocation2] sm:$0x80]
        %v688 = vld [vmem:[#allocation2 + $0x8] sm:$0x80]
        %v689 = vld [vmem:[#allocation2 + $0x10] sm:$0xff]
        %v690 = vld [vmem:[#allocation2 + $0x18] sm:$0xff]
        %v691 = vld [vmem:[#allocation2 + $0x20] sm:$0xff]
        %v692 = vld [vmem:[#allocation2 + $0x28] sm:$0xff]
        %v693 = vld [vmem:[#allocation2 + $0x30] sm:$0xff]
        %v694 = vld [vmem:[#allocation2 + $0x38] sm:$0xff]
        %v695 = vld [vmem:[#allocation2 + $0x40] sm:$0xff]
        %v696 = vld [vmem:[#allocation2 + $0x48] sm:$0xff]
        %v697 = vld [vmem:[#allocation2 + $0x50] sm:$0xff]
        %v698 = vld [vmem:[#allocation2 + $0x58] sm:$0xff]
        %v699 = vld [vmem:[#allocation2 + $0x60] sm:$0xff]
        %v700 = vld [vmem:[#allocation2 + $0x68] sm:$0xff]
        %v701 = vld [vmem:[#allocation2 + $0x70] sm:$0xff]
        %v702 = vld [vmem:[#allocation2 + $0x78] sm:$0xff]
        %v703 = vld [vmem:[#allocation2 + $0x80] sm:$0x7f]
        %v704 = vld [vmem:[#allocation2 + $0x88] sm:$0x7f]
        %v705 = vld [vmem:[#allocation12] ss:$4 sm:$0x3]
        %v707 = vlaneseq
        %v708 = vshrl.u32 %v707, 7
        %v709 = vsub.s32 0, %v708
        %v710 = vrot.slane %v705, %v709
        %v711 = vlaneseq
        %v712 = vshrl.u32 %v711, 7
        %v713 = vsub.s32 1, %v712
        %v714 = vrot.slane %v705, %v713
        %v717 = vmul.f32 %v687, %v710
        %v718 = vmul.f32 %v688, %v714
        %v719 = vmul.f32 %v689, %v710
        %v720 = vmul.f32 %v690, %v714
        %v721 = vmul.f32 %v691, %v710
        %v722 = vmul.f32 %v692, %v714
        %v723 = vmul.f32 %v693, %v710
        %v724 = vmul.f32 %v694, %v714
        %v725 = vmul.f32 %v695, %v710
        %v726 = vmul.f32 %v696, %v714
        %v727 = vmul.f32 %v697, %v710
        %v728 = vmul.f32 %v698, %v714
        %v729 = vmul.f32 %v699, %v710
        %v730 = vmul.f32 %v700, %v714
        %v731 = vmul.f32 %v701, %v710
        %v732 = vmul.f32 %v702, %v714
        %v733 = vmul.f32 %v703, %v710
        %v734 = vmul.f32 %v704, %v714
        %vm753 = vcmask 1040384
        %v754 = vrot.slane %v717, 7
        %v755 = vrot.slane %v719, 7
        %v756 = vsel %vm753, %v754, %v755
        %v757 = vrot.slane %v718, 7
        %v758 = vrot.slane %v720, 7
        %v759 = vsel %vm753, %v757, %v758
        %v760 = vrot.slane %v721, 7
        %v761 = vsel %vm753, %v755, %v760
        %v762 = vrot.slane %v722, 7
        %v763 = vsel %vm753, %v758, %v762
        %v764 = vrot.slane %v723, 7
        %v765 = vsel %vm753, %v760, %v764
        %v766 = vrot.slane %v724, 7
        %v767 = vsel %vm753, %v762, %v766
        %v768 = vrot.slane %v725, 7
        %v769 = vsel %vm753, %v764, %v768
        %v770 = vrot.slane %v726, 7
        %v771 = vsel %vm753, %v766, %v770
        %v772 = vrot.slane %v727, 7
        %v773 = vsel %vm753, %v768, %v772
        %v774 = vrot.slane %v728, 7
        %v775 = vsel %vm753, %v770, %v774
        %v776 = vrot.slane %v729, 7
        %v777 = vsel %vm753, %v772, %v776
        %v778 = vrot.slane %v730, 7
        %v779 = vsel %vm753, %v774, %v778
        %v780 = vrot.slane %v731, 7
        %v781 = vsel %vm753, %v776, %v780
        %v782 = vrot.slane %v732, 7
        %v783 = vsel %vm753, %v778, %v782
        %v784 = vrot.slane %v733, 7
        %v785 = vsel %vm753, %v780, %v784
        %v786 = vrot.slane %v734, 7
        %v787 = vsel %vm753, %v782, %v786
        %v804 = vadd.f32 %v671, %v756
        %v805 = vadd.f32 %v672, %v759
        %v806 = vadd.f32 %v673, %v761
        %v807 = vadd.f32 %v674, %v763
        %v808 = vadd.f32 %v675, %v765
        %v809 = vadd.f32 %v676, %v767
        %v810 = vadd.f32 %v677, %v769
        %v811 = vadd.f32 %v678, %v771
        %v812 = vadd.f32 %v679, %v773
        %v813 = vadd.f32 %v680, %v775
        %v814 = vadd.f32 %v681, %v777
        %v815 = vadd.f32 %v682, %v779
        %v816 = vadd.f32 %v683, %v781
        %v817 = vadd.f32 %v684, %v783
        %v818 = vadd.f32 %v685, %v785
        %v819 = vadd.f32 %v686, %v787
        %v820 = vld [vmem:[#allocation2 + $0x10] sm:$0xfe]
        %v821 = vld [vmem:[#allocation2 + $0x18] sm:$0xfe]
        %v822 = vld [vmem:[#allocation2 + $0x20] sm:$0xff]
        %v823 = vld [vmem:[#allocation2 + $0x28] sm:$0xff]
        %v824 = vld [vmem:[#allocation2 + $0x30] sm:$0xff]
        %v825 = vld [vmem:[#allocation2 + $0x38] sm:$0xff]
        %v826 = vld [vmem:[#allocation2 + $0x40] sm:$0xff]
        %v827 = vld [vmem:[#allocation2 + $0x48] sm:$0xff]
        %v828 = vld [vmem:[#allocation2 + $0x50] sm:$0xff]
        %v829 = vld [vmem:[#allocation2 + $0x58] sm:$0xff]
        %v830 = vld [vmem:[#allocation2 + $0x60] sm:$0xff]
        %v831 = vld [vmem:[#allocation2 + $0x68] sm:$0xff]
        %v832 = vld [vmem:[#allocation2 + $0x70] sm:$0xff]
        %v833 = vld [vmem:[#allocation2 + $0x78] sm:$0xff]
        %v834 = vld [vmem:[#allocation2 + $0x80] sm:$0xff]
        %v835 = vld [vmem:[#allocation2 + $0x88] sm:$0xff]
        %v836 = vld [vmem:[#allocation2 + $0x90] sm:$0x1]
        %v837 = vld [vmem:[#allocation2 + $0x98] sm:$0x1]
        %s838 = scalar_lea.vmem [#allocation12], 2
        %v839 = vld [vmem:[%s838] ss:$4 sm:$0x3]
        %v841 = vlaneseq
        %v842 = vshrl.u32 %v841, 7
        %v843 = vsub.s32 0, %v842
        %v844 = vrot.slane %v839, %v843
        %v845 = vlaneseq
        %v846 = vshrl.u32 %v845, 7
        %v847 = vsub.s32 1, %v846
        %v848 = vrot.slane %v839, %v847
        %v851 = vmul.f32 %v820, %v844
        %v852 = vmul.f32 %v821, %v848
        %v853 = vmul.f32 %v822, %v844
        %v854 = vmul.f32 %v823, %v848
        %v855 = vmul.f32 %v824, %v844
        %v856 = vmul.f32 %v825, %v848
        %v857 = vmul.f32 %v826, %v844
        %v858 = vmul.f32 %v827, %v848
        %v859 = vmul.f32 %v828, %v844
        %v860 = vmul.f32 %v829, %v848
        %v861 = vmul.f32 %v830, %v844
        %v862 = vmul.f32 %v831, %v848
        %v863 = vmul.f32 %v832, %v844
        %v864 = vmul.f32 %v833, %v848
        %v865 = vmul.f32 %v834, %v844
        %v866 = vmul.f32 %v835, %v848
        %v867 = vmul.f32 %v836, %v844
        %v868 = vmul.f32 %v837, %v848
        %vm887 = vcmask 1046528
        %v888 = vrot.slane %v851, 1
        %v889 = vrot.slane %v853, 1
        %v890 = vsel %vm887, %v888, %v889
        %v891 = vrot.slane %v852, 1
        %v892 = vrot.slane %v854, 1
        %v893 = vsel %vm887, %v891, %v892
        %v894 = vrot.slane %v855, 1
        %v895 = vsel %vm887, %v889, %v894
        %v896 = vrot.slane %v856, 1
        %v897 = vsel %vm887, %v892, %v896
        %v898 = vrot.slane %v857, 1
        %v899 = vsel %vm887, %v894, %v898
        %v900 = vrot.slane %v858, 1
        %v901 = vsel %vm887, %v896, %v900
        %v902 = vrot.slane %v859, 1
        %v903 = vsel %vm887, %v898, %v902
        %v904 = vrot.slane %v860, 1
        %v905 = vsel %vm887, %v900, %v904
        %v906 = vrot.slane %v861, 1
        %v907 = vsel %vm887, %v902, %v906
        %v908 = vrot.slane %v862, 1
        %v909 = vsel %vm887, %v904, %v908
        %v910 = vrot.slane %v863, 1
        %v911 = vsel %vm887, %v906, %v910
        %v912 = vrot.slane %v864, 1
        %v913 = vsel %vm887, %v908, %v912
        %v914 = vrot.slane %v865, 1
        %v915 = vsel %vm887, %v910, %v914
        %v916 = vrot.slane %v866, 1
        %v917 = vsel %vm887, %v912, %v916
        %v918 = vrot.slane %v867, 1
        %v919 = vsel %vm887, %v914, %v918
        %v920 = vrot.slane %v868, 1
        %v921 = vsel %vm887, %v916, %v920
        %v938 = vadd.f32 %v804, %v890
        %v939 = vadd.f32 %v805, %v893
        %v940 = vadd.f32 %v806, %v895
        %v941 = vadd.f32 %v807, %v897
        %v942 = vadd.f32 %v808, %v899
        %v943 = vadd.f32 %v809, %v901
        %v944 = vadd.f32 %v810, %v903
        %v945 = vadd.f32 %v811, %v905
        %v946 = vadd.f32 %v812, %v907
        %v947 = vadd.f32 %v813, %v909
        %v948 = vadd.f32 %v814, %v911
        %v949 = vadd.f32 %v815, %v913
        %v950 = vadd.f32 %v816, %v915
        %v951 = vadd.f32 %v817, %v917
        %v952 = vadd.f32 %v818, %v919
        %v953 = vadd.f32 %v819, %v921
        %v954 = vld [vmem:[#allocation2 + $0x10] sm:$0xfc]
        %v955 = vld [vmem:[#allocation2 + $0x18] sm:$0xfc]
        %v956 = vld [vmem:[#allocation2 + $0x90] sm:$0x3]
        %v957 = vld [vmem:[#allocation2 + $0x98] sm:$0x3]
        %s958 = scalar_lea.vmem [#allocation12], 3
        %v959 = vld [vmem:[%s958] ss:$4 sm:$0x3]
        %v961 = vlaneseq
        %v962 = vshrl.u32 %v961, 7
        %v963 = vsub.s32 0, %v962
        %v964 = vrot.slane %v959, %v963
        %v965 = vlaneseq
        %v966 = vshrl.u32 %v965, 7
        %v967 = vsub.s32 1, %v966
        %v968 = vrot.slane %v959, %v967
        %v971 = vmul.f32 %v954, %v964
        %v972 = vmul.f32 %v955, %v968
        %v973 = vmul.f32 %v822, %v964
        %v974 = vmul.f32 %v823, %v968
        %v975 = vmul.f32 %v824, %v964
        %v976 = vmul.f32 %v825, %v968
        %v977 = vmul.f32 %v826, %v964
        %v978 = vmul.f32 %v827, %v968
        %v979 = vmul.f32 %v828, %v964
        %v980 = vmul.f32 %v829, %v968
        %v981 = vmul.f32 %v830, %v964
        %v982 = vmul.f32 %v831, %v968
        %v983 = vmul.f32 %v832, %v964
        %v984 = vmul.f32 %v833, %v968
        %v985 = vmul.f32 %v834, %v964
        %v986 = vmul.f32 %v835, %v968
        %v987 = vmul.f32 %v956, %v964
        %v988 = vmul.f32 %v957, %v968
        %vm1007 = vcmask 1045504
        %v1008 = vrot.slane %v971, 2
        %v1009 = vrot.slane %v973, 2
        %v1010 = vsel %vm1007, %v1008, %v1009
        %v1011 = vrot.slane %v972, 2
        %v1012 = vrot.slane %v974, 2
        %v1013 = vsel %vm1007, %v1011, %v1012
        %v1014 = vrot.slane %v975, 2
        %v1015 = vsel %vm1007, %v1009, %v1014
        %v1016 = vrot.slane %v976, 2
        %v1017 = vsel %vm1007, %v1012, %v1016
        %v1018 = vrot.slane %v977, 2
        %v1019 = vsel %vm1007, %v1014, %v1018
        %v1020 = vrot.slane %v978, 2
        %v1021 = vsel %vm1007, %v1016, %v1020
        %v1022 = vrot.slane %v979, 2
        %v1023 = vsel %vm1007, %v1018, %v1022
        %v1024 = vrot.slane %v980, 2
        %v1025 = vsel %vm1007, %v1020, %v1024
        %v1026 = vrot.slane %v981, 2
        %v1027 = vsel %vm1007, %v1022, %v1026
        %v1028 = vrot.slane %v982, 2
        %v1029 = vsel %vm1007, %v1024, %v1028
        %v1030 = vrot.slane %v983, 2
        %v1031 = vsel %vm1007, %v1026, %v1030
        %v1032 = vrot.slane %v984, 2
        %v1033 = vsel %vm1007, %v1028, %v1032
        %v1034 = vrot.slane %v985, 2
        %v1035 = vsel %vm1007, %v1030, %v1034
        %v1036 = vrot.slane %v986, 2
        %v1037 = vsel %vm1007, %v1032, %v1036
        %v1038 = vrot.slane %v987, 2
        %v1039 = vsel %vm1007, %v1034, %v1038
        %v1040 = vrot.slane %v988, 2
        %v1041 = vsel %vm1007, %v1036, %v1040
        %v1058 = vadd.f32 %v938, %v1010
        %v1059 = vadd.f32 %v939, %v1013
        %v1060 = vadd.f32 %v940, %v1015
        %v1061 = vadd.f32 %v941, %v1017
        %v1062 = vadd.f32 %v942, %v1019
        %v1063 = vadd.f32 %v943, %v1021
        %v1064 = vadd.f32 %v944, %v1023
        %v1065 = vadd.f32 %v945, %v1025
        %v1066 = vadd.f32 %v946, %v1027
        %v1067 = vadd.f32 %v947, %v1029
        %v1068 = vadd.f32 %v948, %v1031
        %v1069 = vadd.f32 %v949, %v1033
        %v1070 = vadd.f32 %v950, %v1035
        %v1071 = vadd.f32 %v951, %v1037
        %v1072 = vadd.f32 %v952, %v1039
        %v1073 = vadd.f32 %v953, %v1041
        %v1074 = vxor.u32 %v1058, 2147483648
        %v1075 = vxor.u32 %v1059, 2147483648
        %v1076 = vxor.u32 %v1060, 2147483648
        %v1077 = vxor.u32 %v1061, 2147483648
        %v1078 = vxor.u32 %v1062, 2147483648
        %v1079 = vxor.u32 %v1063, 2147483648
        %v1080 = vxor.u32 %v1064, 2147483648
        %v1081 = vxor.u32 %v1065, 2147483648
        %v1082 = vxor.u32 %v1066, 2147483648
        %v1083 = vxor.u32 %v1067, 2147483648
        %v1084 = vxor.u32 %v1068, 2147483648
        %v1085 = vxor.u32 %v1069, 2147483648
        %v1086 = vxor.u32 %v1070, 2147483648
        %v1087 = vxor.u32 %v1071, 2147483648
        %v1088 = vxor.u32 %v1072, 2147483648
        %v1089 = vxor.u32 %v1073, 2147483648
        %v1090 = vmul.f32 %v1074, 1.442695
        %v1091 = vpow.pop %v1090
        %v1092 = vmul.f32 %v1075, 1.442695
        %v1093 = vpow.pop %v1092
        %v1094 = vmul.f32 %v1076, 1.442695
        %v1095 = vpow.pop %v1094
        %v1096 = vmul.f32 %v1077, 1.442695
        %v1097 = vpow.pop %v1096
        %v1098 = vmul.f32 %v1078, 1.442695
        %v1099 = vpow.pop %v1098
        %v1100 = vmul.f32 %v1079, 1.442695
        %v1101 = vpow.pop %v1100
        %v1102 = vmul.f32 %v1080, 1.442695
        %v1103 = vpow.pop %v1102
        %v1104 = vmul.f32 %v1081, 1.442695
        %v1105 = vpow.pop %v1104
        %v1106 = vmul.f32 %v1082, 1.442695
        %v1107 = vpow.pop %v1106
        %v1108 = vmul.f32 %v1083, 1.442695
        %v1109 = vpow.pop %v1108
        %v1110 = vmul.f32 %v1084, 1.442695
        %v1111 = vpow.pop %v1110
        %v1112 = vmul.f32 %v1085, 1.442695
        %v1113 = vpow.pop %v1112
        %v1114 = vmul.f32 %v1086, 1.442695
        %v1115 = vpow.pop %v1114
        %v1116 = vmul.f32 %v1087, 1.442695
        %v1117 = vpow.pop %v1116
        %v1118 = vmul.f32 %v1088, 1.442695
        %v1119 = vpow.pop %v1118
        %v1120 = vmul.f32 %v1089, 1.442695
        %v1121 = vpow.pop %v1120
        %v1122 = vadd.f32 %v1091, 1.0
        %v1123 = vadd.f32 %v1093, 1.0
        %v1124 = vadd.f32 %v1095, 1.0
        %v1125 = vadd.f32 %v1097, 1.0
        %v1126 = vadd.f32 %v1099, 1.0
        %v1127 = vadd.f32 %v1101, 1.0
        %v1128 = vadd.f32 %v1103, 1.0
        %v1129 = vadd.f32 %v1105, 1.0
        %v1130 = vadd.f32 %v1107, 1.0
        %v1131 = vadd.f32 %v1109, 1.0
        %v1132 = vadd.f32 %v1111, 1.0
        %v1133 = vadd.f32 %v1113, 1.0
        %v1134 = vadd.f32 %v1115, 1.0
        %v1135 = vadd.f32 %v1117, 1.0
        %v1136 = vadd.f32 %v1119, 1.0
        %v1137 = vadd.f32 %v1121, 1.0
        %v1138 = vrcp.pop %v1122
        %v1139 = vmul.f32 1.0, %v1138
        %v1140 = vrcp.pop %v1123
        %v1141 = vmul.f32 1.0, %v1140
        %v1142 = vrcp.pop %v1124
        %v1143 = vmul.f32 1.0, %v1142
        %v1144 = vrcp.pop %v1125
        %v1145 = vmul.f32 1.0, %v1144
        %v1146 = vrcp.pop %v1126
        %v1147 = vmul.f32 1.0, %v1146
        %v1148 = vrcp.pop %v1127
        %v1149 = vmul.f32 1.0, %v1148
        %v1150 = vrcp.pop %v1128
        %v1151 = vmul.f32 1.0, %v1150
        %v1152 = vrcp.pop %v1129
        %v1153 = vmul.f32 1.0, %v1152
        %v1154 = vrcp.pop %v1130
        %v1155 = vmul.f32 1.0, %v1154
        %v1156 = vrcp.pop %v1131
        %v1157 = vmul.f32 1.0, %v1156
        %v1158 = vrcp.pop %v1132
        %v1159 = vmul.f32 1.0, %v1158
        %v1160 = vrcp.pop %v1133
        %v1161 = vmul.f32 1.0, %v1160
        %v1162 = vrcp.pop %v1134
        %v1163 = vmul.f32 1.0, %v1162
        %v1164 = vrcp.pop %v1135
        %v1165 = vmul.f32 1.0, %v1164
        %v1166 = vrcp.pop %v1136
        %v1167 = vmul.f32 1.0, %v1166
        %v1168 = vrcp.pop %v1137
        %v1169 = vmul.f32 1.0, %v1168
        %v1170 = vmul.f32 %v1058, %v1139
        %v1171 = vmul.f32 %v1059, %v1141
        %v1172 = vmul.f32 %v1060, %v1143
        %v1173 = vmul.f32 %v1061, %v1145
        %v1174 = vmul.f32 %v1062, %v1147
        %v1175 = vmul.f32 %v1063, %v1149
        %v1176 = vmul.f32 %v1064, %v1151
        %v1177 = vmul.f32 %v1065, %v1153
        %v1178 = vmul.f32 %v1066, %v1155
        %v1179 = vmul.f32 %v1067, %v1157
        %v1180 = vmul.f32 %v1068, %v1159
        %v1181 = vmul.f32 %v1069, %v1161
        %v1182 = vmul.f32 %v1070, %v1163
        %v1183 = vmul.f32 %v1071, %v1165
        %v1184 = vmul.f32 %v1072, %v1167
        %v1185 = vmul.f32 %v1073, %v1169
        %1186 = vst [vmem:[#allocation6] sm:$0xff] %v1171
        %1187 = vst [vmem:[#allocation6 + $0x8] sm:$0xff] %v1173
        %1188 = vst [vmem:[#allocation6 + $0x10] sm:$0xff] %v1175
        %1189 = vst [vmem:[#allocation6 + $0x18] sm:$0xff] %v1177
        %1190 = vst [vmem:[#allocation6 + $0x20] sm:$0xff] %v1179
        %1191 = vst [vmem:[#allocation6 + $0x28] sm:$0xff] %v1181
        %1192 = vst [vmem:[#allocation6 + $0x30] sm:$0xff] %v1183
        %1193 = vst [vmem:[#allocation6 + $0x38] sm:$0xff] %v1185
        %v1194 = vpack.c.bf16 %v1172, %v1170
        %v1195 = vpack.c.bf16 %v1176, %v1174
        %v1196 = vpack.c.bf16 %v1180, %v1178
        %v1197 = vpack.c.bf16 %v1184, %v1182
        %v1198 = vld [vmem:[#allocation13] sm:$0xf]
        %v1199 = vld [vmem:[#allocation13 + $0x4] sm:$0xf]
        %v1200 = vld [vmem:[#allocation13 + $0x8] sm:$0xf]
        %v1201 = vld [vmem:[#allocation13 + $0xc] sm:$0xf]
        %v1202 = vld [vmem:[#allocation13 + $0x10] sm:$0xf]
        %v1203 = vld [vmem:[#allocation13 + $0x14] sm:$0xf]
        %v1204 = vld [vmem:[#allocation13 + $0x18] sm:$0xf]
        %v1205 = vld [vmem:[#allocation13 + $0x1c] sm:$0xf]
        %v1206 = vld [vmem:[#allocation13 + $0x20] sm:$0xf]
        %v1207 = vld [vmem:[#allocation13 + $0x24] sm:$0xf]
        %v1208 = vld [vmem:[#allocation13 + $0x28] sm:$0xf]
        %v1209 = vld [vmem:[#allocation13 + $0x2c] sm:$0xf]
        %v1210 = vld [vmem:[#allocation13 + $0x30] sm:$0xf]
        %v1211 = vld [vmem:[#allocation13 + $0x34] sm:$0xf]
        %v1212 = vld [vmem:[#allocation13 + $0x38] sm:$0xf]
        %v1213 = vld [vmem:[#allocation13 + $0x3c] sm:$0xf]
        %v1214 = vld [vmem:[%s5] sm:$0x1]
        %v1216 = vlaneseq
        %v1217 = vshrl.u32 %v1216, 7
        %v1218 = vsub.s32 0, %v1217
        %v1219 = vrot.slane %v1214, %v1218
        %v1237 = vunpack.c.l.b16 %v1198
        %v1238 = vunpack.c.l.b16 %v1199
        %v1239 = vunpack.c.l.b16 %v1200
        %v1240 = vunpack.c.l.b16 %v1201
        %v1241 = vunpack.c.l.b16 %v1202
        %v1242 = vunpack.c.l.b16 %v1203
        %v1243 = vunpack.c.l.b16 %v1204
        %v1244 = vunpack.c.l.b16 %v1205
        %v1245 = vunpack.c.l.b16 %v1206
        %v1246 = vunpack.c.l.b16 %v1207
        %v1247 = vunpack.c.l.b16 %v1208
        %v1248 = vunpack.c.l.b16 %v1209
        %v1249 = vunpack.c.l.b16 %v1210
        %v1250 = vunpack.c.l.b16 %v1211
        %v1251 = vunpack.c.l.b16 %v1212
        %v1252 = vunpack.c.l.b16 %v1213
        %v1253 = vpack.c.b16 %v1238, %v1237
        %v1254 = vpack.c.b16 %v1240, %v1239
        %v1255 = vpack.c.b16 %v1242, %v1241
        %v1256 = vpack.c.b16 %v1244, %v1243
        %v1257 = vpack.c.b16 %v1246, %v1245
        %v1258 = vpack.c.b16 %v1248, %v1247
        %v1259 = vpack.c.b16 %v1250, %v1249
        %v1260 = vpack.c.b16 %v1252, %v1251
        %1269 = vmatprep.subr.bf16.mxu0 0
        %1270 = vmatpush1.bf16.msra.mxu0 %v1260
        %1271 = vmatprep.subr.bf16.mxu0 0
        %1272 = vmatpush1.bf16.msra.mxu0 %v1259
        %1273 = vmatprep.subr.bf16.mxu0 0
        %1274 = vmatpush1.bf16.msra.mxu0 %v1258
        %1275 = vmatprep.subr.bf16.mxu0 0
        %1276 = vmatpush1.bf16.msra.mxu0 %v1257
        %1277 = vmatprep.subr.bf16.mxu0 0
        %1278 = vmatpush1.bf16.msra.mxu0 %v1256
        %1279 = vmatprep.subr.bf16.mxu0 0
        %1280 = vmatpush1.bf16.msra.mxu0 %v1255
        %1281 = vmatprep.subr.bf16.mxu0 0
        %1282 = vmatpush1.bf16.msra.mxu0 %v1254
        %1283 = vmatprep.subr.bf16.mxu0 0
        %1284 = vmatpush1.bf16.msra.mxu0 %v1253
        %1285 = vmatprep.subr.bf16.mxu0 0
        %1286 = vmatpush2.bf16.msra.mxu0 0
        %1287 = vmatprep.subr.bf16.mxu0 0
        %1288 = vmatpush2.bf16.msra.mxu0 0
        %1289 = vmatprep.subr.bf16.mxu0 0
        %1290 = vmatpush2.bf16.msra.mxu0 0
        %1291 = vmatprep.subr.bf16.mxu0 0
        %1292 = vmatpush2.bf16.msra.mxu0 0
        %1293 = vmatprep.subr.bf16.mxu0 0
        %1294 = vmatpush2.bf16.msra.mxu0 0
        %1295 = vmatprep.subr.bf16.mxu0 0
        %1296 = vmatpush2.bf16.msra.mxu0 0
        %1297 = vmatprep.subr.bf16.mxu0 0
        %1298 = vmatpush2.bf16.msra.mxu0 0
        %1299 = vmatprep.subr.bf16.mxu0 0
        %1300 = vmatpush2.bf16.msra.mxu0 0
        %1301 = vmatprep.mubr.bf16.mxu0 0
        %1302 = vmatmul.mubr.bf16.gmra.mxu0 %v1194
        %v1303 = vpop.f32.mrf.mxu0
        %v1304 = vadd.f32 %v1219, %v1303
        %v1305 = vpop.f32.mrf.mxu0
        %v1306 = vpop.f32.mrf.mxu0
        %v1307 = vadd.f32 %v1219, %v1306
        %v1308 = vpop.f32.mrf.mxu0
        %1309 = vmatprep.mubr.bf16.mxu0 0
        %1310 = vmatmul.mubr.bf16.gmra.mxu0 %v1195
        %v1311 = vpop.f32.mrf.mxu0
        %v1312 = vadd.f32 %v1219, %v1311
        %v1313 = vpop.f32.mrf.mxu0
        %v1314 = vpop.f32.mrf.mxu0
        %v1315 = vadd.f32 %v1219, %v1314
        %v1316 = vpop.f32.mrf.mxu0
        %1317 = vmatprep.mubr.bf16.mxu0 0
        %1318 = vmatmul.mubr.bf16.gmra.mxu0 %v1196
        %v1319 = vpop.f32.mrf.mxu0
        %v1320 = vadd.f32 %v1219, %v1319
        %v1321 = vpop.f32.mrf.mxu0
        %v1322 = vpop.f32.mrf.mxu0
        %v1323 = vadd.f32 %v1219, %v1322
        %v1324 = vpop.f32.mrf.mxu0
        %1325 = vmatprep.mubr.bf16.mxu0 0
        %1326 = vmatmul.mubr.bf16.gmra.mxu0 %v1197
        %v1327 = vpop.f32.mrf.mxu0
        %v1328 = vadd.f32 %v1219, %v1327
        %v1329 = vpop.f32.mrf.mxu0
        %v1330 = vpop.f32.mrf.mxu0
        %v1331 = vadd.f32 %v1219, %v1330
        %v1332 = vpop.f32.mrf.mxu0
        %1333 = vdwg.mxu0
        %v1334 = vadd.f32 %v1304, %v1219
        %v1335 = vadd.f32 %v1307, %v1219
        %v1336 = vadd.f32 %v1312, %v1219
        %v1337 = vadd.f32 %v1315, %v1219
        %v1338 = vadd.f32 %v1320, %v1219
        %v1339 = vadd.f32 %v1323, %v1219
        %v1340 = vadd.f32 %v1328, %v1219
        %v1341 = vadd.f32 %v1331, %v1219
        %v1342 = vmax.f32 %v1334, 0.0
        %v1343 = vmax.f32 %v1335, 0.0
        %v1344 = vmax.f32 %v1336, 0.0
        %v1345 = vmax.f32 %v1337, 0.0
        %v1346 = vmax.f32 %v1338, 0.0
        %v1347 = vmax.f32 %v1339, 0.0
        %v1348 = vmax.f32 %v1340, 0.0
        %v1349 = vmax.f32 %v1341, 0.0
        %vm1350 = vcmp.ne.f32.partialorder %v1334, %v1334
        %vm1351 = vcmp.ne.f32.partialorder %v1335, %v1335
        %vm1352 = vcmp.ne.f32.partialorder %v1336, %v1336
        %vm1353 = vcmp.ne.f32.partialorder %v1337, %v1337
        %vm1354 = vcmp.ne.f32.partialorder %v1338, %v1338
        %vm1355 = vcmp.ne.f32.partialorder %v1339, %v1339
        %vm1356 = vcmp.ne.f32.partialorder %v1340, %v1340
        %vm1357 = vcmp.ne.f32.partialorder %v1341, %v1341
        %v1358 = vadd.f32 %v1334, 0.0
        %v1359 = vadd.f32 %v1335, 0.0
        %v1360 = vadd.f32 %v1336, 0.0
        %v1361 = vadd.f32 %v1337, 0.0
        %v1362 = vadd.f32 %v1338, 0.0
        %v1363 = vadd.f32 %v1339, 0.0
        %v1364 = vadd.f32 %v1340, 0.0
        %v1365 = vadd.f32 %v1341, 0.0
        %v1366 = vand.u32 2147483647, %v1334
        %v1367 = vand.u32 2147483647, %v1335
        %v1368 = vand.u32 2147483647, %v1336
        %v1369 = vand.u32 2147483647, %v1337
        %v1370 = vand.u32 2147483647, %v1338
        %v1371 = vand.u32 2147483647, %v1339
        %v1372 = vand.u32 2147483647, %v1340
        %v1373 = vand.u32 2147483647, %v1341
        %v1374 = vsub.f32 0.0, %v1366
        %v1375 = vsub.f32 0.0, %v1367
        %v1376 = vsub.f32 0.0, %v1368
        %v1377 = vsub.f32 0.0, %v1369
        %v1378 = vsub.f32 0.0, %v1370
        %v1379 = vsub.f32 0.0, %v1371
        %v1380 = vsub.f32 0.0, %v1372
        %v1381 = vsub.f32 0.0, %v1373
        %v1382 = vmul.f32 %v1374, 1.442695
        %v1383 = vpow.pop %v1382
        %v1384 = vmul.f32 %v1375, 1.442695
        %v1385 = vpow.pop %v1384
        %v1386 = vmul.f32 %v1376, 1.442695
        %v1387 = vpow.pop %v1386
        %v1388 = vmul.f32 %v1377, 1.442695
        %v1389 = vpow.pop %v1388
        %v1390 = vmul.f32 %v1378, 1.442695
        %v1391 = vpow.pop %v1390
        %v1392 = vmul.f32 %v1379, 1.442695
        %v1393 = vpow.pop %v1392
        %v1394 = vmul.f32 %v1380, 1.442695
        %v1395 = vpow.pop %v1394
        %v1396 = vmul.f32 %v1381, 1.442695
        %v1397 = vpow.pop %v1396
        %v1398 = vadd.f32 %v1383, 1.0
        %v1399 = vlog2.pop %v1398
        %v1400 = vmul.f32 %v1399, 0.6931472
        %v1401 = vmul.f32 -0.5, %v1383
        %v1402 = vadd.f32 %v1401, 1.0
        %v1403 = vmul.f32 %v1402, %v1383
        %v1404 = vand.u32 2147483647, %v1383
        %vm1405 = vcmp.lt.f32.partialorder %v1404, 0.0004427343
        %v1406 = vsel %vm1405, %v1403, %v1400
        %v1407 = vadd.f32 %v1385, 1.0
        %v1408 = vlog2.pop %v1407
        %v1409 = vmul.f32 %v1408, 0.6931472
        %v1410 = vmul.f32 -0.5, %v1385
        %v1411 = vadd.f32 %v1410, 1.0
        %v1412 = vmul.f32 %v1411, %v1385
        %v1413 = vand.u32 2147483647, %v1385
        %vm1414 = vcmp.lt.f32.partialorder %v1413, 0.0004427343
        %v1415 = vsel %vm1414, %v1412, %v1409
        %v1416 = vadd.f32 %v1387, 1.0
        %v1417 = vlog2.pop %v1416
        %v1418 = vmul.f32 %v1417, 0.6931472
        %v1419 = vmul.f32 -0.5, %v1387
        %v1420 = vadd.f32 %v1419, 1.0
        %v1421 = vmul.f32 %v1420, %v1387
        %v1422 = vand.u32 2147483647, %v1387
        %vm1423 = vcmp.lt.f32.partialorder %v1422, 0.0004427343
        %v1424 = vsel %vm1423, %v1421, %v1418
        %v1425 = vadd.f32 %v1389, 1.0
        %v1426 = vlog2.pop %v1425
        %v1427 = vmul.f32 %v1426, 0.6931472
        %v1428 = vmul.f32 -0.5, %v1389
        %v1429 = vadd.f32 %v1428, 1.0
        %v1430 = vmul.f32 %v1429, %v1389
        %v1431 = vand.u32 2147483647, %v1389
        %vm1432 = vcmp.lt.f32.partialorder %v1431, 0.0004427343
        %v1433 = vsel %vm1432, %v1430, %v1427
        %v1434 = vadd.f32 %v1391, 1.0
        %v1435 = vlog2.pop %v1434
        %v1436 = vmul.f32 %v1435, 0.6931472
        %v1437 = vmul.f32 -0.5, %v1391
        %v1438 = vadd.f32 %v1437, 1.0
        %v1439 = vmul.f32 %v1438, %v1391
        %v1440 = vand.u32 2147483647, %v1391
        %vm1441 = vcmp.lt.f32.partialorder %v1440, 0.0004427343
        %v1442 = vsel %vm1441, %v1439, %v1436
        %v1443 = vadd.f32 %v1393, 1.0
        %v1444 = vlog2.pop %v1443
        %v1445 = vmul.f32 %v1444, 0.6931472
        %v1446 = vmul.f32 -0.5, %v1393
        %v1447 = vadd.f32 %v1446, 1.0
        %v1448 = vmul.f32 %v1447, %v1393
        %v1449 = vand.u32 2147483647, %v1393
        %vm1450 = vcmp.lt.f32.partialorder %v1449, 0.0004427343
        %v1451 = vsel %vm1450, %v1448, %v1445
        %v1452 = vadd.f32 %v1395, 1.0
        %v1453 = vlog2.pop %v1452
        %v1454 = vmul.f32 %v1453, 0.6931472
        %v1455 = vmul.f32 -0.5, %v1395
        %v1456 = vadd.f32 %v1455, 1.0
        %v1457 = vmul.f32 %v1456, %v1395
        %v1458 = vand.u32 2147483647, %v1395
        %vm1459 = vcmp.lt.f32.partialorder %v1458, 0.0004427343
        %v1460 = vsel %vm1459, %v1457, %v1454
        %v1461 = vadd.f32 %v1397, 1.0
        %v1462 = vlog2.pop %v1461
        %v1463 = vmul.f32 %v1462, 0.6931472
        %v1464 = vmul.f32 -0.5, %v1397
        %v1465 = vadd.f32 %v1464, 1.0
        %v1466 = vmul.f32 %v1465, %v1397
        %v1467 = vand.u32 2147483647, %v1397
        %vm1468 = vcmp.lt.f32.partialorder %v1467, 0.0004427343
        %v1469 = vsel %vm1468, %v1466, %v1463
        %v1470 = vadd.f32 %v1342, %v1406
        %v1471 = vadd.f32 %v1343, %v1415
        %v1472 = vadd.f32 %v1344, %v1424
        %v1473 = vadd.f32 %v1345, %v1433
        %v1474 = vadd.f32 %v1346, %v1442
        %v1475 = vadd.f32 %v1347, %v1451
        %v1476 = vadd.f32 %v1348, %v1460
        %v1477 = vadd.f32 %v1349, %v1469
        %v1478 = vsel %vm1350, %v1358, %v1470
        %v1479 = vsel %vm1351, %v1359, %v1471
        %v1480 = vsel %vm1352, %v1360, %v1472
        %v1481 = vsel %vm1353, %v1361, %v1473
        %v1482 = vsel %vm1354, %v1362, %v1474
        %v1483 = vsel %vm1355, %v1363, %v1475
        %v1484 = vsel %vm1356, %v1364, %v1476
        %v1485 = vsel %vm1357, %v1365, %v1477
        %1486 = vst [vmem:[#allocation3] sm:$0xff] %v1170
        %1487 = vst [vmem:[#allocation3 + $0x8] sm:$0xff] %v1172
        %1488 = vst [vmem:[#allocation3 + $0x10] sm:$0xff] %v1174
        %1489 = vst [vmem:[#allocation3 + $0x18] sm:$0xff] %v1176
        %1490 = vst [vmem:[#allocation3 + $0x20] sm:$0xff] %v1178
        %1491 = vst [vmem:[#allocation3 + $0x28] sm:$0xff] %v1180
        %1492 = vst [vmem:[#allocation3 + $0x30] sm:$0xff] %v1182
        %1493 = vst [vmem:[#allocation3 + $0x38] sm:$0xff] %v1184
        %1494 = vst [vmem:[#allocation4] sm:$0xff] %v1478
        %1495 = vst [vmem:[#allocation4 + $0x8] sm:$0xff] %v1479
        %1496 = vst [vmem:[#allocation4 + $0x10] sm:$0xff] %v1480
        %1497 = vst [vmem:[#allocation4 + $0x18] sm:$0xff] %v1481
        %1498 = vst [vmem:[#allocation4 + $0x20] sm:$0xff] %v1482
        %1499 = vst [vmem:[#allocation4 + $0x28] sm:$0xff] %v1483
        %1500 = vst [vmem:[#allocation4 + $0x30] sm:$0xff] %v1484
        %1501 = vst [vmem:[#allocation4 + $0x38] sm:$0xff] %v1485
        %v1502 = vld [vmem:[#allocation16] sm:$0xff]
        %v1503 = vld [vmem:[#allocation16 + $0x8] sm:$0xff]
        %v1504 = vld [vmem:[%s7] sm:$0x1]
        %v1505 = vld [vmem:[#allocation15] sm:$0xf]
        %v1506 = vld [vmem:[#allocation15 + $0x4] sm:$0xf]
        %v1507 = vld [vmem:[#allocation15 + $0x8] sm:$0xf]
        %v1508 = vld [vmem:[#allocation15 + $0xc] sm:$0xf]
        loop: start=0, step=1, limit=8
        $region85: #{tpu_custom_call.1} parent=55 // loop_pre_header
          _
        $region86: #{tpu_custom_call.1} parent=55 // loop_header
          %s1510 = sphi 0, %s1514
          %p1511 = scmp.ge.s32.totalorder %s1510, 8
          %v1515 = vphi 0.0, %v1965
          %v1516 = vphi 0.0, %v1966
        $region87: #{tpu_custom_call.1} parent=55 // loop_header_branch
          %1513 = sbr.rel (%p1511) target = $region91
        $region88: #{tpu_custom_call.1} parent=55 // loop_body
          %s1517 = smul.u32 %s1510, 8
          %s1518 = scalar_lea.vmem [#allocation3], %s1517
          %v1519 = vld [vmem:[%s1518] sm:$0xff]
          %s1520 = scalar_lea.vmem [#allocation4], %s1517
          %v1521 = vld [vmem:[%s1520] sm:$0xff]
          %v1522 = vpack.c.bf16 %v1519, %v1519
          %v1527 = vunpack.c.l.b16 %v1505
          %v1528 = vunpack.c.l.b16 %v1506
          %v1529 = vunpack.c.l.b16 %v1507
          %v1530 = vunpack.c.l.b16 %v1508
          %v1531 = vpack.c.b16 %v1528, %v1527
          %v1532 = vpack.c.b16 %v1530, %v1529
          %1535 = vmatprep.subr.bf16.mxu0 0
          %1536 = vmatpush1.bf16.xpose.msra.mxu0 0
          %1537 = vmatprep.subr.bf16.mxu0 0
          %1538 = vmatpush1.bf16.xpose.msra.mxu0 0
          %1539 = vmatprep.subr.bf16.mxu0 0
          %1540 = vmatpush1.bf16.xpose.msra.mxu0 0
          %1541 = vmatprep.subr.bf16.mxu0 0
          %1542 = vmatpush1.bf16.xpose.msra.mxu0 0
          %1543 = vmatprep.subr.bf16.mxu0 0
          %1544 = vmatpush1.bf16.xpose.msra.mxu0 0
          %1545 = vmatprep.subr.bf16.mxu0 0
          %1546 = vmatpush1.bf16.xpose.msra.mxu0 0
          %1547 = vmatprep.subr.bf16.mxu0 0
          %1548 = vmatpush1.bf16.xpose.msra.mxu0 0
          %1549 = vmatprep.subr.bf16.mxu0 0
          %1550 = vmatpush1.bf16.xpose.msra.mxu0 %v1522
          %1551 = vmatprep.subr.bf16.mxu0 0
          %1552 = vmatpush2.bf16.xpose.msra.mxu0 0
          %1553 = vmatprep.subr.bf16.mxu0 0
          %1554 = vmatpush2.bf16.xpose.msra.mxu0 0
          %1555 = vmatprep.subr.bf16.mxu0 0
          %1556 = vmatpush2.bf16.xpose.msra.mxu0 0
          %1557 = vmatprep.subr.bf16.mxu0 0
          %1558 = vmatpush2.bf16.xpose.msra.mxu0 0
          %1559 = vmatprep.subr.bf16.mxu0 0
          %1560 = vmatpush2.bf16.xpose.msra.mxu0 0
          %1561 = vmatprep.subr.bf16.mxu0 0
          %1562 = vmatpush2.bf16.xpose.msra.mxu0 0
          %1563 = vmatprep.subr.bf16.mxu0 0
          %1564 = vmatpush2.bf16.xpose.msra.mxu0 0
          %1565 = vmatprep.subr.bf16.mxu0 0
          %1566 = vmatpush2.bf16.xpose.msra.mxu0 0
          %1567 = vmatprep.mubr.bf16.mxu0 0
          %1568 = vmatmul.mubr.bf16.gmra.mxu0 %v1531
          %v1569 = vpop.f32.mrf.mxu0
          %v1570 = vadd.f32 0.0, %v1569
          %v1571 = vpop.f32.mrf.mxu0
          %v1572 = vpop.f32.mrf.mxu0
          %v1573 = vadd.f32 0.0, %v1572
          %v1574 = vpop.f32.mrf.mxu0
          %1575 = vmatprep.mubr.bf16.mxu0 0
          %1576 = vmatmul.mubr.bf16.gmra.mxu0 %v1532
          %v1577 = vpop.f32.mrf.mxu0
          %v1578 = vadd.f32 0.0, %v1577
          %v1579 = vpop.f32.mrf.mxu0
          %v1580 = vpop.f32.mrf.mxu0
          %v1581 = vadd.f32 0.0, %v1580
          %v1582 = vpop.f32.mrf.mxu0
          %1583 = vdwg.mxu0
          %v1584 = vlaneseq
          %v1585 = vshrl.u32 %v1584, 7
          %v1586 = vsub.s32 0, %v1585
          %v1587 = vrot.slane %v1521, %v1586
          %v1588 = vmul.f32 %v1587, %v1502
          %v1589 = vmul.f32 %v1587, %v1503
          %v1590 = vmul.f32 %v1588, 1.442695
          %v1591 = vpow.pop %v1590
          %v1592 = vmul.f32 %v1589, 1.442695
          %v1593 = vpow.pop %v1592
          %v1594 = vlaneseq
          %v1595 = vshrl.u32 %v1594, 7
          %v1596 = vsub.s32 1, %v1595
          %v1597 = vrot.slane %v1521, %v1596
          %v1598 = vmul.f32 %v1597, %v1502
          %v1599 = vmul.f32 %v1597, %v1503
          %v1600 = vmul.f32 %v1598, 1.442695
          %v1601 = vpow.pop %v1600
          %v1602 = vmul.f32 %v1599, 1.442695
          %v1603 = vpow.pop %v1602
          %v1604 = vlaneseq
          %v1605 = vshrl.u32 %v1604, 7
          %v1606 = vsub.s32 2, %v1605
          %v1607 = vrot.slane %v1521, %v1606
          %v1608 = vmul.f32 %v1607, %v1502
          %v1609 = vmul.f32 %v1607, %v1503
          %v1610 = vmul.f32 %v1608, 1.442695
          %v1611 = vpow.pop %v1610
          %v1612 = vmul.f32 %v1609, 1.442695
          %v1613 = vpow.pop %v1612
          %v1614 = vlaneseq
          %v1615 = vshrl.u32 %v1614, 7
          %v1616 = vsub.s32 3, %v1615
          %v1617 = vrot.slane %v1521, %v1616
          %v1618 = vmul.f32 %v1617, %v1502
          %v1619 = vmul.f32 %v1617, %v1503
          %v1620 = vmul.f32 %v1618, 1.442695
          %v1621 = vpow.pop %v1620
          %v1622 = vmul.f32 %v1619, 1.442695
          %v1623 = vpow.pop %v1622
          %v1624 = vlaneseq
          %v1625 = vshrl.u32 %v1624, 7
          %v1626 = vsub.s32 4, %v1625
          %v1627 = vrot.slane %v1521, %v1626
          %v1628 = vmul.f32 %v1627, %v1502
          %v1629 = vmul.f32 %v1627, %v1503
          %v1630 = vmul.f32 %v1628, 1.442695
          %v1631 = vpow.pop %v1630
          %v1632 = vmul.f32 %v1629, 1.442695
          %v1633 = vpow.pop %v1632
          %v1634 = vlaneseq
          %v1635 = vshrl.u32 %v1634, 7
          %v1636 = vsub.s32 5, %v1635
          %v1637 = vrot.slane %v1521, %v1636
          %v1638 = vmul.f32 %v1637, %v1502
          %v1639 = vmul.f32 %v1637, %v1503
          %v1640 = vmul.f32 %v1638, 1.442695
          %v1641 = vpow.pop %v1640
          %v1642 = vmul.f32 %v1639, 1.442695
          %v1643 = vpow.pop %v1642
          %v1644 = vlaneseq
          %v1645 = vshrl.u32 %v1644, 7
          %v1646 = vsub.s32 6, %v1645
          %v1647 = vrot.slane %v1521, %v1646
          %v1648 = vmul.f32 %v1647, %v1502
          %v1649 = vmul.f32 %v1647, %v1503
          %v1650 = vmul.f32 %v1648, 1.442695
          %v1651 = vpow.pop %v1650
          %v1652 = vmul.f32 %v1649, 1.442695
          %v1653 = vpow.pop %v1652
          %v1654 = vlaneseq
          %v1655 = vshrl.u32 %v1654, 7
          %v1656 = vsub.s32 7, %v1655
          %v1657 = vrot.slane %v1521, %v1656
          %v1658 = vmul.f32 %v1657, %v1502
          %v1659 = vmul.f32 %v1657, %v1503
          %v1660 = vmul.f32 %v1658, 1.442695
          %v1661 = vpow.pop %v1660
          %v1662 = vmul.f32 %v1659, 1.442695
          %v1663 = vpow.pop %v1662
          %v1664 = vmul.f32 %v1521, %v1519
          %v1665 = vmul.f32 %v1591, %v1515
          %v1666 = vmul.f32 %v1593, %v1516
          %v1667 = vlaneseq
          %v1668 = vshrl.u32 %v1667, 7
          %v1669 = vsub.s32 0, %v1668
          %v1670 = vrot.slane %v1664, %v1669
          %1672 = vset.pattern.permute.xlu0 0
          %1673 = vperm.xlu0 %1672, %v1570
          %v1674 = vpop.permute.xlu0 %1673
          %1677 = vset.pattern.permute.xlu0 0
          %1678 = vperm.xlu0 %1677, %v1573
          %v1679 = vpop.permute.xlu0 %1678
          %v1681 = vmul.f32 %v1670, %v1674
          %v1682 = vmul.f32 %v1670, %v1679
          %v1683 = vadd.f32 %v1665, %v1681
          %v1684 = vadd.f32 %v1666, %v1682
          %1686 = vset.pattern.permute.xlu0 0
          %1687 = vperm.xlu0 %1686, %v1578
          %v1688 = vpop.permute.xlu0 %1687
          %1691 = vset.pattern.permute.xlu0 0
          %1692 = vperm.xlu0 %1691, %v1581
          %v1693 = vpop.permute.xlu0 %1692
          %v1695 = vmul.f32 %v1683, %v1688
          %v1696 = vmul.f32 %v1684, %v1693
          %v1697 = vadd.f32 %v1695, %v1696
          %v1698 = vrot.slane %v1697, 4
          %v1699 = vadd.f32 %v1697, %v1698
          %v1700 = vrot.slane %v1699, 2
          %v1701 = vadd.f32 %v1699, %v1700
          %v1702 = vrot.slane %v1701, 1
          %v1703 = vadd.f32 %v1701, %v1702
          %v1704 = vmul.f32 %v1519, %v1504
          %v1705 = vadd.f32 %v1703, %v1704
          %s1706 = scalar_lea.vmem [#allocation5], %s1517
          %1707 = vst [vmem:[%s1706] sm:$0x1] %v1705
          %v1708 = vmul.f32 %v1601, %v1683
          %v1709 = vmul.f32 %v1603, %v1684
          %v1710 = vlaneseq
          %v1711 = vshrl.u32 %v1710, 7
          %v1712 = vsub.s32 1, %v1711
          %v1713 = vrot.slane %v1664, %v1712
          %1714 = vset.pattern.permute.xlu0 1
          %1715 = vperm.xlu0 %1714, %v1570
          %v1716 = vpop.permute.xlu0 %1715
          %1718 = vset.pattern.permute.xlu0 1
          %1719 = vperm.xlu0 %1718, %v1573
          %v1720 = vpop.permute.xlu0 %1719
          %v1722 = vmul.f32 %v1713, %v1716
          %v1723 = vmul.f32 %v1713, %v1720
          %v1724 = vadd.f32 %v1708, %v1722
          %v1725 = vadd.f32 %v1709, %v1723
          %1726 = vset.pattern.permute.xlu0 1
          %1727 = vperm.xlu0 %1726, %v1578
          %v1728 = vpop.permute.xlu0 %1727
          %1730 = vset.pattern.permute.xlu0 1
          %1731 = vperm.xlu0 %1730, %v1581
          %v1732 = vpop.permute.xlu0 %1731
          %v1734 = vmul.f32 %v1724, %v1728
          %v1735 = vmul.f32 %v1725, %v1732
          %v1736 = vadd.f32 %v1734, %v1735
          %v1737 = vrot.slane %v1736, 4
          %v1738 = vadd.f32 %v1736, %v1737
          %v1739 = vrot.slane %v1738, 2
          %v1740 = vadd.f32 %v1738, %v1739
          %v1741 = vrot.slane %v1740, 1
          %v1742 = vadd.f32 %v1740, %v1741
          %v1744 = vlaneseq
          %v1745 = vshrl.u32 %v1744, 7
          %v1746 = vsub.s32 0, %v1745
          %v1747 = vrot.slane %v1504, %v1746
          %v1749 = vmul.f32 %v1519, %v1747
          %v1750 = vadd.f32 %v1742, %v1749
          %s1751 = sadd.s32 %s1517, 1
          %s1752 = scalar_lea.vmem [#allocation5], %s1751
          %1753 = vst [vmem:[%s1752 - $0x1] sm:$0x2] %v1750
          %v1754 = vmul.f32 %v1611, %v1724
          %v1755 = vmul.f32 %v1613, %v1725
          %v1756 = vlaneseq
          %v1757 = vshrl.u32 %v1756, 7
          %v1758 = vsub.s32 2, %v1757
          %v1759 = vrot.slane %v1664, %v1758
          %1760 = vset.pattern.permute.xlu0 2
          %1761 = vperm.xlu0 %1760, %v1570
          %v1762 = vpop.permute.xlu0 %1761
          %1764 = vset.pattern.permute.xlu0 2
          %1765 = vperm.xlu0 %1764, %v1573
          %v1766 = vpop.permute.xlu0 %1765
          %v1768 = vmul.f32 %v1759, %v1762
          %v1769 = vmul.f32 %v1759, %v1766
          %v1770 = vadd.f32 %v1754, %v1768
          %v1771 = vadd.f32 %v1755, %v1769
          %1772 = vset.pattern.permute.xlu0 2
          %1773 = vperm.xlu0 %1772, %v1578
          %v1774 = vpop.permute.xlu0 %1773
          %1776 = vset.pattern.permute.xlu0 2
          %1777 = vperm.xlu0 %1776, %v1581
          %v1778 = vpop.permute.xlu0 %1777
          %v1780 = vmul.f32 %v1770, %v1774
          %v1781 = vmul.f32 %v1771, %v1778
          %v1782 = vadd.f32 %v1780, %v1781
          %v1783 = vrot.slane %v1782, 4
          %v1784 = vadd.f32 %v1782, %v1783
          %v1785 = vrot.slane %v1784, 2
          %v1786 = vadd.f32 %v1784, %v1785
          %v1787 = vrot.slane %v1786, 1
          %v1788 = vadd.f32 %v1786, %v1787
          %v1789 = vadd.f32 %v1788, %v1749
          %s1790 = sadd.s32 %s1517, 2
          %s1791 = scalar_lea.vmem [#allocation5], %s1790
          %1792 = vst [vmem:[%s1791 - $0x2] sm:$0x4] %v1789
          %v1793 = vmul.f32 %v1621, %v1770
          %v1794 = vmul.f32 %v1623, %v1771
          %v1795 = vlaneseq
          %v1796 = vshrl.u32 %v1795, 7
          %v1797 = vsub.s32 3, %v1796
          %v1798 = vrot.slane %v1664, %v1797
          %1799 = vset.pattern.permute.xlu0 3
          %1800 = vperm.xlu0 %1799, %v1570
          %v1801 = vpop.permute.xlu0 %1800
          %1803 = vset.pattern.permute.xlu0 3
          %1804 = vperm.xlu0 %1803, %v1573
          %v1805 = vpop.permute.xlu0 %1804
          %v1807 = vmul.f32 %v1798, %v1801
          %v1808 = vmul.f32 %v1798, %v1805
          %v1809 = vadd.f32 %v1793, %v1807
          %v1810 = vadd.f32 %v1794, %v1808
          %1811 = vset.pattern.permute.xlu0 3
          %1812 = vperm.xlu0 %1811, %v1578
          %v1813 = vpop.permute.xlu0 %1812
          %1815 = vset.pattern.permute.xlu0 3
          %1816 = vperm.xlu0 %1815, %v1581
          %v1817 = vpop.permute.xlu0 %1816
          %v1819 = vmul.f32 %v1809, %v1813
          %v1820 = vmul.f32 %v1810, %v1817
          %v1821 = vadd.f32 %v1819, %v1820
          %v1822 = vrot.slane %v1821, 4
          %v1823 = vadd.f32 %v1821, %v1822
          %v1824 = vrot.slane %v1823, 2
          %v1825 = vadd.f32 %v1823, %v1824
          %v1826 = vrot.slane %v1825, 1
          %v1827 = vadd.f32 %v1825, %v1826
          %v1828 = vadd.f32 %v1827, %v1749
          %s1829 = sadd.s32 %s1517, 3
          %s1830 = scalar_lea.vmem [#allocation5], %s1829
          %1831 = vst [vmem:[%s1830 - $0x3] sm:$0x8] %v1828
          %v1832 = vmul.f32 %v1631, %v1809
          %v1833 = vmul.f32 %v1633, %v1810
          %v1834 = vlaneseq
          %v1835 = vshrl.u32 %v1834, 7
          %v1836 = vsub.s32 4, %v1835
          %v1837 = vrot.slane %v1664, %v1836
          %1838 = vset.pattern.permute.xlu0 4
          %1839 = vperm.xlu0 %1838, %v1570
          %v1840 = vpop.permute.xlu0 %1839
          %1842 = vset.pattern.permute.xlu0 4
          %1843 = vperm.xlu0 %1842, %v1573
          %v1844 = vpop.permute.xlu0 %1843
          %v1846 = vmul.f32 %v1837, %v1840
          %v1847 = vmul.f32 %v1837, %v1844
          %v1848 = vadd.f32 %v1832, %v1846
          %v1849 = vadd.f32 %v1833, %v1847
          %1850 = vset.pattern.permute.xlu0 4
          %1851 = vperm.xlu0 %1850, %v1578
          %v1852 = vpop.permute.xlu0 %1851
          %1854 = vset.pattern.permute.xlu0 4
          %1855 = vperm.xlu0 %1854, %v1581
          %v1856 = vpop.permute.xlu0 %1855
          %v1858 = vmul.f32 %v1848, %v1852
          %v1859 = vmul.f32 %v1849, %v1856
          %v1860 = vadd.f32 %v1858, %v1859
          %v1861 = vrot.slane %v1860, 4
          %v1862 = vadd.f32 %v1860, %v1861
          %v1863 = vrot.slane %v1862, 2
          %v1864 = vadd.f32 %v1862, %v1863
          %v1865 = vrot.slane %v1864, 1
          %v1866 = vadd.f32 %v1864, %v1865
          %v1867 = vadd.f32 %v1866, %v1749
          %s1868 = sadd.s32 %s1517, 4
          %s1869 = scalar_lea.vmem [#allocation5], %s1868
          %1870 = vst [vmem:[%s1869 - $0x4] sm:$0x10] %v1867
          %v1871 = vmul.f32 %v1641, %v1848
          %v1872 = vmul.f32 %v1643, %v1849
          %v1873 = vlaneseq
          %v1874 = vshrl.u32 %v1873, 7
          %v1875 = vsub.s32 5, %v1874
          %v1876 = vrot.slane %v1664, %v1875
          %1877 = vset.pattern.permute.xlu0 5
          %1878 = vperm.xlu0 %1877, %v1570
          %v1879 = vpop.permute.xlu0 %1878
          %1881 = vset.pattern.permute.xlu0 5
          %1882 = vperm.xlu0 %1881, %v1573
          %v1883 = vpop.permute.xlu0 %1882
          %v1885 = vmul.f32 %v1876, %v1879
          %v1886 = vmul.f32 %v1876, %v1883
          %v1887 = vadd.f32 %v1871, %v1885
          %v1888 = vadd.f32 %v1872, %v1886
          %1889 = vset.pattern.permute.xlu0 5
          %1890 = vperm.xlu0 %1889, %v1578
          %v1891 = vpop.permute.xlu0 %1890
          %1893 = vset.pattern.permute.xlu0 5
          %1894 = vperm.xlu0 %1893, %v1581
          %v1895 = vpop.permute.xlu0 %1894
          %v1897 = vmul.f32 %v1887, %v1891
          %v1898 = vmul.f32 %v1888, %v1895
          %v1899 = vadd.f32 %v1897, %v1898
          %v1900 = vrot.slane %v1899, 4
          %v1901 = vadd.f32 %v1899, %v1900
          %v1902 = vrot.slane %v1901, 2
          %v1903 = vadd.f32 %v1901, %v1902
          %v1904 = vrot.slane %v1903, 1
          %v1905 = vadd.f32 %v1903, %v1904
          %v1906 = vadd.f32 %v1905, %v1749
          %s1907 = sadd.s32 %s1517, 5
          %s1908 = scalar_lea.vmem [#allocation5], %s1907
          %1909 = vst [vmem:[%s1908 - $0x5] sm:$0x20] %v1906
          %v1910 = vmul.f32 %v1651, %v1887
          %v1911 = vmul.f32 %v1653, %v1888
          %v1912 = vlaneseq
          %v1913 = vshrl.u32 %v1912, 7
          %v1914 = vsub.s32 6, %v1913
          %v1915 = vrot.slane %v1664, %v1914
          %1916 = vset.pattern.permute.xlu0 6
          %1917 = vperm.xlu0 %1916, %v1570
          %v1918 = vpop.permute.xlu0 %1917
          %1920 = vset.pattern.permute.xlu0 6
          %1921 = vperm.xlu0 %1920, %v1573
          %v1922 = vpop.permute.xlu0 %1921
          %v1924 = vmul.f32 %v1915, %v1918
          %v1925 = vmul.f32 %v1915, %v1922
          %v1926 = vadd.f32 %v1910, %v1924
          %v1927 = vadd.f32 %v1911, %v1925
          %1928 = vset.pattern.permute.xlu0 6
          %1929 = vperm.xlu0 %1928, %v1578
          %v1930 = vpop.permute.xlu0 %1929
          %1932 = vset.pattern.permute.xlu0 6
          %1933 = vperm.xlu0 %1932, %v1581
          %v1934 = vpop.permute.xlu0 %1933
          %v1936 = vmul.f32 %v1926, %v1930
          %v1937 = vmul.f32 %v1927, %v1934
          %v1938 = vadd.f32 %v1936, %v1937
          %v1939 = vrot.slane %v1938, 4
          %v1940 = vadd.f32 %v1938, %v1939
          %v1941 = vrot.slane %v1940, 2
          %v1942 = vadd.f32 %v1940, %v1941
          %v1943 = vrot.slane %v1942, 1
          %v1944 = vadd.f32 %v1942, %v1943
          %v1945 = vadd.f32 %v1944, %v1749
          %s1946 = sadd.s32 %s1517, 6
          %s1947 = scalar_lea.vmem [#allocation5], %s1946
          %1948 = vst [vmem:[%s1947 - $0x6] sm:$0x40] %v1945
          %v1949 = vmul.f32 %v1661, %v1926
          %v1950 = vmul.f32 %v1663, %v1927
          %v1951 = vlaneseq
          %v1952 = vshrl.u32 %v1951, 7
          %v1953 = vsub.s32 7, %v1952
          %v1954 = vrot.slane %v1664, %v1953
          %1955 = vset.pattern.permute.xlu0 7
          %1956 = vperm.xlu0 %1955, %v1570
          %v1957 = vpop.permute.xlu0 %1956
          %1959 = vset.pattern.permute.xlu0 7
          %1960 = vperm.xlu0 %1959, %v1573
          %v1961 = vpop.permute.xlu0 %1960
          %v1963 = vmul.f32 %v1954, %v1957
          %v1964 = vmul.f32 %v1954, %v1961
          %v1965 = vadd.f32 %v1949, %v1963
          %v1966 = vadd.f32 %v1950, %v1964
          %1967 = vset.pattern.permute.xlu0 7
          %1968 = vperm.xlu0 %1967, %v1578
          %v1969 = vpop.permute.xlu0 %1968
          %1971 = vset.pattern.permute.xlu0 7
          %1972 = vperm.xlu0 %1971, %v1581
          %v1973 = vpop.permute.xlu0 %1972
          %v1975 = vmul.f32 %v1965, %v1969
          %v1976 = vmul.f32 %v1966, %v1973
          %v1977 = vadd.f32 %v1975, %v1976
          %v1978 = vrot.slane %v1977, 4
          %v1979 = vadd.f32 %v1977, %v1978
          %v1980 = vrot.slane %v1979, 2
          %v1981 = vadd.f32 %v1979, %v1980
          %v1982 = vrot.slane %v1981, 1
          %v1983 = vadd.f32 %v1981, %v1982
          %v1984 = vadd.f32 %v1983, %v1749
          %s1985 = sadd.s32 %s1517, 7
          %s1986 = scalar_lea.vmem [#allocation5], %s1985
          %1987 = vst [vmem:[%s1986 - $0x7] sm:$0x80] %v1984
        $region89: #{tpu_custom_call.1} parent=55 // loop_footer
          %s1514 = sadd.s32 1, %s1510
        $region90: #{tpu_custom_call.1} parent=55 // loop_footer_branch
          %1509 = sbr.rel target = $region86
        $region91: #{tpu_custom_call.1} parent=55 // loop_exit
          _
        %v1988 = vld [vmem:[#allocation5] sm:$0xff]
        %v1989 = vld [vmem:[#allocation5 + $0x8] sm:$0xff]
        %v1990 = vld [vmem:[#allocation5 + $0x10] sm:$0xff]
        %v1991 = vld [vmem:[#allocation5 + $0x18] sm:$0xff]
        %v1992 = vld [vmem:[#allocation5 + $0x20] sm:$0xff]
        %v1993 = vld [vmem:[#allocation5 + $0x28] sm:$0xff]
        %v1994 = vld [vmem:[#allocation5 + $0x30] sm:$0xff]
        %v1995 = vld [vmem:[#allocation5 + $0x38] sm:$0xff]
        %v1996 = vld [vmem:[#allocation6] sm:$0xff]
        %v1997 = vld [vmem:[#allocation6 + $0x8] sm:$0xff]
        %v1998 = vld [vmem:[#allocation6 + $0x10] sm:$0xff]
        %v1999 = vld [vmem:[#allocation6 + $0x18] sm:$0xff]
        %v2000 = vld [vmem:[#allocation6 + $0x20] sm:$0xff]
        %v2001 = vld [vmem:[#allocation6 + $0x28] sm:$0xff]
        %v2002 = vld [vmem:[#allocation6 + $0x30] sm:$0xff]
        %v2003 = vld [vmem:[#allocation6 + $0x38] sm:$0xff]
        %v2004 = vpack.c.bf16 %v1989, %v1988
        %v2005 = vpack.c.bf16 %v1997, %v1996
        %v2006 = vpack.c.bf16 %v1991, %v1990
        %v2007 = vpack.c.bf16 %v1999, %v1998
        %v2008 = vpack.c.bf16 %v1993, %v1992
        %v2009 = vpack.c.bf16 %v2001, %v2000
        %v2010 = vpack.c.bf16 %v1995, %v1994
        %v2011 = vpack.c.bf16 %v2003, %v2002
        %v2012 = vld [vmem:[#allocation18] sm:$0xf]
        %v2013 = vld [vmem:[#allocation18 + $0x4] sm:$0xf]
        %v2014 = vld [vmem:[#allocation18 + $0x8] sm:$0xf]
        %v2015 = vld [vmem:[#allocation18 + $0xc] sm:$0xf]
        %v2016 = vld [vmem:[#allocation18 + $0x10] sm:$0xf]
        %v2017 = vld [vmem:[#allocation18 + $0x14] sm:$0xf]
        %v2018 = vld [vmem:[#allocation18 + $0x18] sm:$0xf]
        %v2019 = vld [vmem:[#allocation18 + $0x1c] sm:$0xf]
        %v2020 = vld [vmem:[#allocation18 + $0x20] sm:$0xf]
        %v2021 = vld [vmem:[#allocation18 + $0x24] sm:$0xf]
        %v2022 = vld [vmem:[#allocation18 + $0x28] sm:$0xf]
        %v2023 = vld [vmem:[#allocation18 + $0x2c] sm:$0xf]
        %v2024 = vld [vmem:[#allocation18 + $0x30] sm:$0xf]
        %v2025 = vld [vmem:[#allocation18 + $0x34] sm:$0xf]
        %v2026 = vld [vmem:[#allocation18 + $0x38] sm:$0xf]
        %v2027 = vld [vmem:[#allocation18 + $0x3c] sm:$0xf]
        %v2028 = vld [vmem:[#allocation18 + $0x40] sm:$0xf]
        %v2029 = vld [vmem:[#allocation18 + $0x44] sm:$0xf]
        %v2030 = vld [vmem:[#allocation18 + $0x48] sm:$0xf]
        %v2031 = vld [vmem:[#allocation18 + $0x4c] sm:$0xf]
        %v2032 = vld [vmem:[#allocation18 + $0x50] sm:$0xf]
        %v2033 = vld [vmem:[#allocation18 + $0x54] sm:$0xf]
        %v2034 = vld [vmem:[#allocation18 + $0x58] sm:$0xf]
        %v2035 = vld [vmem:[#allocation18 + $0x5c] sm:$0xf]
        %v2036 = vld [vmem:[#allocation18 + $0x60] sm:$0xf]
        %v2037 = vld [vmem:[#allocation18 + $0x64] sm:$0xf]
        %v2038 = vld [vmem:[#allocation18 + $0x68] sm:$0xf]
        %v2039 = vld [vmem:[#allocation18 + $0x6c] sm:$0xf]
        %v2040 = vld [vmem:[#allocation18 + $0x70] sm:$0xf]
        %v2041 = vld [vmem:[#allocation18 + $0x74] sm:$0xf]
        %v2042 = vld [vmem:[#allocation18 + $0x78] sm:$0xf]
        %v2043 = vld [vmem:[#allocation18 + $0x7c] sm:$0xf]
        %v2076 = vunpack.c.l.b16 %v2012
        %v2077 = vunpack.c.l.b16 %v2013
        %v2078 = vunpack.c.l.b16 %v2014
        %v2079 = vunpack.c.l.b16 %v2015
        %v2080 = vunpack.c.l.b16 %v2016
        %v2081 = vunpack.c.l.b16 %v2017
        %v2082 = vunpack.c.l.b16 %v2018
        %v2083 = vunpack.c.l.b16 %v2019
        %v2084 = vunpack.c.l.b16 %v2020
        %v2085 = vunpack.c.l.b16 %v2021
        %v2086 = vunpack.c.l.b16 %v2022
        %v2087 = vunpack.c.l.b16 %v2023
        %v2088 = vunpack.c.l.b16 %v2024
        %v2089 = vunpack.c.l.b16 %v2025
        %v2090 = vunpack.c.l.b16 %v2026
        %v2091 = vunpack.c.l.b16 %v2027
        %v2092 = vunpack.c.l.b16 %v2028
        %v2093 = vunpack.c.l.b16 %v2029
        %v2094 = vunpack.c.l.b16 %v2030
        %v2095 = vunpack.c.l.b16 %v2031
        %v2096 = vunpack.c.l.b16 %v2032
        %v2097 = vunpack.c.l.b16 %v2033
        %v2098 = vunpack.c.l.b16 %v2034
        %v2099 = vunpack.c.l.b16 %v2035
        %v2100 = vunpack.c.l.b16 %v2036
        %v2101 = vunpack.c.l.b16 %v2037
        %v2102 = vunpack.c.l.b16 %v2038
        %v2103 = vunpack.c.l.b16 %v2039
        %v2104 = vunpack.c.l.b16 %v2040
        %v2105 = vunpack.c.l.b16 %v2041
        %v2106 = vunpack.c.l.b16 %v2042
        %v2107 = vunpack.c.l.b16 %v2043
        %v2108 = vpack.c.b16 %v2077, %v2076
        %v2109 = vpack.c.b16 %v2079, %v2078
        %v2110 = vpack.c.b16 %v2081, %v2080
        %v2111 = vpack.c.b16 %v2083, %v2082
        %v2112 = vpack.c.b16 %v2085, %v2084
        %v2113 = vpack.c.b16 %v2087, %v2086
        %v2114 = vpack.c.b16 %v2089, %v2088
        %v2115 = vpack.c.b16 %v2091, %v2090
        %v2116 = vpack.c.b16 %v2093, %v2092
        %v2117 = vpack.c.b16 %v2095, %v2094
        %v2118 = vpack.c.b16 %v2097, %v2096
        %v2119 = vpack.c.b16 %v2099, %v2098
        %v2120 = vpack.c.b16 %v2101, %v2100
        %v2121 = vpack.c.b16 %v2103, %v2102
        %v2122 = vpack.c.b16 %v2105, %v2104
        %v2123 = vpack.c.b16 %v2107, %v2106
        %2140 = vmatprep.subr.bf16.mxu0 0
        %2141 = vmatpush1.bf16.msra.mxu0 %v2115
        %2142 = vmatprep.subr.bf16.mxu0 0
        %2143 = vmatpush1.bf16.msra.mxu0 %v2114
        %2144 = vmatprep.subr.bf16.mxu0 0
        %2145 = vmatpush1.bf16.msra.mxu0 %v2113
        %2146 = vmatprep.subr.bf16.mxu0 0
        %2147 = vmatpush1.bf16.msra.mxu0 %v2112
        %2148 = vmatprep.subr.bf16.mxu0 0
        %2149 = vmatpush1.bf16.msra.mxu0 %v2111
        %2150 = vmatprep.subr.bf16.mxu0 0
        %2151 = vmatpush1.bf16.msra.mxu0 %v2110
        %2152 = vmatprep.subr.bf16.mxu0 0
        %2153 = vmatpush1.bf16.msra.mxu0 %v2109
        %2154 = vmatprep.subr.bf16.mxu0 0
        %2155 = vmatpush1.bf16.msra.mxu0 %v2108
        %2156 = vmatprep.subr.bf16.mxu0 0
        %2157 = vmatpush2.bf16.msra.mxu0 %v2123
        %2158 = vmatprep.subr.bf16.mxu0 0
        %2159 = vmatpush2.bf16.msra.mxu0 %v2122
        %2160 = vmatprep.subr.bf16.mxu0 0
        %2161 = vmatpush2.bf16.msra.mxu0 %v2121
        %2162 = vmatprep.subr.bf16.mxu0 0
        %2163 = vmatpush2.bf16.msra.mxu0 %v2120
        %2164 = vmatprep.subr.bf16.mxu0 0
        %2165 = vmatpush2.bf16.msra.mxu0 %v2119
        %2166 = vmatprep.subr.bf16.mxu0 0
        %2167 = vmatpush2.bf16.msra.mxu0 %v2118
        %2168 = vmatprep.subr.bf16.mxu0 0
        %2169 = vmatpush2.bf16.msra.mxu0 %v2117
        %2170 = vmatprep.subr.bf16.mxu0 0
        %2171 = vmatpush2.bf16.msra.mxu0 %v2116
        %2172 = vmatprep.mubr.bf16.mxu0 %v2005
        %2173 = vmatmul.mubr.bf16.gmra.mxu0 %v2004
        %v2174 = vpop.f32.mrf.mxu0
        %v2175 = vadd.f32 0.0, %v2174
        %v2176 = vpop.f32.mrf.mxu0
        %v2177 = vpop.f32.mrf.mxu0
        %v2178 = vadd.f32 0.0, %v2177
        %v2179 = vpop.f32.mrf.mxu0
        %2180 = vmatprep.mubr.bf16.mxu0 %v2007
        %2181 = vmatmul.mubr.bf16.gmra.mxu0 %v2006
        %v2182 = vpop.f32.mrf.mxu0
        %v2183 = vadd.f32 0.0, %v2182
        %v2184 = vpop.f32.mrf.mxu0
        %v2185 = vpop.f32.mrf.mxu0
        %v2186 = vadd.f32 0.0, %v2185
        %v2187 = vpop.f32.mrf.mxu0
        %2188 = vmatprep.mubr.bf16.mxu0 %v2009
        %2189 = vmatmul.mubr.bf16.gmra.mxu0 %v2008
        %v2190 = vpop.f32.mrf.mxu0
        %v2191 = vadd.f32 0.0, %v2190
        %v2192 = vpop.f32.mrf.mxu0
        %v2193 = vpop.f32.mrf.mxu0
        %v2194 = vadd.f32 0.0, %v2193
        %v2195 = vpop.f32.mrf.mxu0
        %2196 = vmatprep.mubr.bf16.mxu0 %v2011
        %2197 = vmatmul.mubr.bf16.gmra.mxu0 %v2010
        %v2198 = vpop.f32.mrf.mxu0
        %v2199 = vadd.f32 0.0, %v2198
        %v2200 = vpop.f32.mrf.mxu0
        %v2201 = vpop.f32.mrf.mxu0
        %v2202 = vadd.f32 0.0, %v2201
        %v2203 = vpop.f32.mrf.mxu0
        %2204 = vdwg.mxu0
        %2205 = vst [vmem:[%s435] sm:$0xff] %v2175
        %2206 = vst [vmem:[%s435 + $0x8] sm:$0xff] %v2178
        %2207 = vst [vmem:[%s435 + $0x10] sm:$0xff] %v2183
        %2208 = vst [vmem:[%s435 + $0x18] sm:$0xff] %v2186
        %2209 = vst [vmem:[%s435 + $0x20] sm:$0xff] %v2191
        %2210 = vst [vmem:[%s435 + $0x28] sm:$0xff] %v2194
        %2211 = vst [vmem:[%s435 + $0x30] sm:$0xff] %v2199
        %2212 = vst [vmem:[%s435 + $0x38] sm:$0xff] %v2202
        %s2213 = sand.u32 %s231, 1
        %s2214 = scalar_lea.sflag [#allocation9], %s2213
        %s2215 = sand.u32 %s231, 1
        %s2216 = smul.addr %s2215, 64
        %s2217 = scalar_lea.vmem [#allocation19], %s2216
        // Predicated region
        $region92: #{tpu_custom_call.1} parent=55 // pred_check
          %p2218 = pneg %p241
        $region93: #{tpu_custom_call.1} parent=55 // pred_check_branch
          %2220 = sbr.rel (%p2218) target = $region95
        $region94: #{tpu_custom_call.1} parent=55 // pred_region
          %s2222 = ssub.s32 1024, 1024
          %2223 = vsyncadd %s2214, %s2222
          %s2224 = smul.addr %s29, 8
          %s2225 = smul.addr %s2224, 128
          %s2226 = scalar_lea.hbm %s9, %s2225
          %s2227 = sshll.u32 %s2217, 4
          %s2228 = int_to_ptr.vmem [resolvable:$true] %s2227
          %2233 = dma.vmem_to_hbm [thread:$0]  %s2228, 1024, %s2226, %s2214, 128, 128, 8
        $region95: #{tpu_custom_call.1} parent=55 // pred_fallthru
          _
      $region56: #{tpu_custom_call.1} parent=5 // pred_fallthru
        _
      %p2234 = scmp.le.s32.totalorder 2, %s24
      // Predicated region
      $region96: #{tpu_custom_call.1} parent=5 // pred_check
        %p2235 = pneg %p2234
      $region97: #{tpu_custom_call.1} parent=5 // pred_check_branch
        %2237 = sbr.rel (%p2235) target = $region99
      $region98: #{tpu_custom_call.1} parent=5 // pred_region
        %s2238 = ssub.s32 %s24, 2
        // Predicated region
        $region100: #{tpu_custom_call.1} parent=98 // pred_check
          %p2239 = pneg %p247
        $region101: #{tpu_custom_call.1} parent=98 // pred_check_branch
          %2241 = sbr.rel (%p2239) target = $region103
        $region102: #{tpu_custom_call.1} parent=98 // pred_region
          %s2242 = sand.u32 %s232, 1
          %s2243 = scalar_lea.sflag [#allocation9], %s2242
          %s2244 = sand.u32 %s232, 1
          %s2245 = smul.addr %s2244, 64
          %s2246 = scalar_lea.vmem [#allocation19], %s2245
          %2247 = dma.done %s2243, 1024
        $region103: #{tpu_custom_call.1} parent=98 // pred_fallthru
          _
      $region99: #{tpu_custom_call.1} parent=5 // pred_fallthru
        _
    $region6: #{tpu_custom_call.1} parent=1 // loop_footer
      %s28 = sadd.s32 1, %s24
    $region7: #{tpu_custom_call.1} parent=1 // loop_footer_branch
      %23 = sbr.rel target = $region3
    $region8: #{tpu_custom_call.1} parent=1 // loop_exit
      _
    %2248 = vsyncpa [#allocation8], 1
    %s2249 = scalar_lea.sflag [#allocation8], 1
    %2250 = vsyncpa %s2249, 1
    %2251 = vsyncpa [#allocation11], 1
    %2252 = vsyncpa [#allocation14], 1
    %2253 = vsyncpa [#allocation17], 1
    %2254 = vsyncpa [#allocation9], 1
    %s2255 = scalar_lea.sflag [#allocation9], 1
    %2256 = vsyncpa %s2255, 1

</llo_original>
